<compile_context>
chip_gen: v7x
topology: tpu7x:2x2x1
jax: 0.10.0
libtpu: 0.0.40
codegen_flags: <defaults>
</compile_context>

<pallas_src>
import functools

import jax
import jax.numpy as jnp
from jax.experimental import pallas as pl
from jax.experimental.pallas import tpu as pltpu

GCN_DEPTH = 2
ALPHA = 0.3
ZONEOUT_RATE = 0.3   # module ties the zoneout rate to dropout_prob
LN_EPS = 1e-5


def graphgru_kernel(x_ref, h_ref, adj_ref,
                    wx_ref, whur_ref, whc_ref, b_ref,
                    gamma_ref, beta_ref,
                    out_ref, next_h_ref,
                    *, n_nodes, batch_tile, hidden_dim):
    N, TB, H = n_nodes, batch_tile, hidden_dim

    x = x_ref[...]                       # (TB*N, Cin_pad)  bf16
    h = h_ref[...]                       # (TB*N, H)        bf16
    adj = adj_ref[...]                   # (N, N)           bf16
    h_f32 = h.astype(jnp.float32)

    def propagate(feat):
        # Block-diagonal (per batch element) adjacency propagation:
        #   out[b*N:(b+1)*N] = adj @ feat[b*N:(b+1)*N]
        pieces = [
            jnp.dot(adj, feat[b * N:(b + 1) * N, :],
                    preferred_element_type=jnp.float32)
            for b in range(TB)
        ]
        return pieces[0] if TB == 1 else jnp.concatenate(pieces, axis=0)

    def mixhop(z, w_ref):
        # Mix-hop propagation of z with per-hop output weights w_ref[k]:
        #   h0 = z ; hk = alpha*z + (1-alpha) * A @ h_{k-1} ; out = sum_k hk @ W_k
        acc = jnp.dot(z, w_ref[0], preferred_element_type=jnp.float32)
        z_f32 = z.astype(jnp.float32)
        hk = z
        for k in range(1, GCN_DEPTH + 1):
            hk = (ALPHA * z_f32
                  + (1.0 - ALPHA) * propagate(hk)).astype(jnp.bfloat16)
            acc += jnp.dot(hk, w_ref[k], preferred_element_type=jnp.float32)
        return acc

    # Shared x-chain, fused output over the 3 gates (update | reset | cell).
    acc_x = mixhop(x, wx_ref) + b_ref[...]          # (TB*N, 3H)  f32
    # Shared h-chain for update & reset (both propagate the same h).
    acc_h_ur = mixhop(h, whur_ref)                  # (TB*N, 2H)  f32

    update_gate = jax.nn.sigmoid(acc_x[:, 0:H] + acc_h_ur[:, 0:H])
    reset_gate = jax.nn.sigmoid(acc_x[:, H:2 * H] + acc_h_ur[:, H:2 * H])

    # Cell gate propagates reset_gate * h -> needs its own h-chain.
    rh = (reset_gate * h_f32).astype(jnp.bfloat16)
    cell_state = jnp.tanh(acc_x[:, 2 * H:3 * H] + mixhop(rh, whc_ref))

    next_hidden = update_gate * h_f32 + (1.0 - update_gate) * cell_state

    # LayerNorm over the hidden (last) dim, in f32.
    mean = jnp.mean(next_hidden, axis=-1, keepdims=True)
    var = jnp.mean(jnp.square(next_hidden - mean), axis=-1, keepdims=True)
    ln = (next_hidden - mean) * jax.lax.rsqrt(var + LN_EPS)
    ln = ln * gamma_ref[...] + beta_ref[...]

    out_ref[...] = ln.astype(out_ref.dtype)
    # Zoneout (eval mode): deterministic blend with the previous hidden state.
    next_h_ref[...] = (ZONEOUT_RATE * h_f32
                       + (1.0 - ZONEOUT_RATE) * ln).astype(next_h_ref.dtype)


def graphgru_forward(x, hidden, norm_adj, params, *, batch_tile=None):
    """x: (B, N, in_dim), hidden: (B, N, H), norm_adj: (N, N) pre-normalized."""
    B, N, in_dim = x.shape
    H = hidden.shape[-1]
    K = GCN_DEPTH + 1

    # Batch tile: amortize per-grid-step overhead; must divide B.
    if batch_tile is None:
        batch_tile = B if B <= 8 else max(t for t in range(1, 9) if B % t == 0)
    TB = batch_tile
    assert B % TB == 0, "batch_tile must divide the batch size"
    grid = (B // TB,)

    # Pad in_dim to a multiple of 16 (bf16 sublane tile) with zeros.
    in_pad = ((in_dim + 15) // 16) * 16
    if in_pad != in_dim:
        x = jnp.pad(x, ((0, 0), (0, 0), (0, in_pad - in_dim)))

    # Fuse gate weights: x-side across all 3 gates, h-side across update/reset.
    wx_u, wh_u, b_u = params["update"]
    wx_r, wh_r, b_r = params["reset"]
    wx_c, wh_c, b_c = params["cell"]
    wx_all = jnp.concatenate([wx_u, wx_r, wx_c], axis=-1)       # (K, in_dim, 3H)
    if in_pad != in_dim:
        wx_all = jnp.pad(wx_all, ((0, 0), (0, in_pad - in_dim), (0, 0)))
    wh_ur = jnp.concatenate([wh_u, wh_r], axis=-1)              # (K, H, 2H)
    b_all = jnp.concatenate([b_u, b_r, b_c], axis=-1)           # (1, 3H)
    gamma, beta = params["layernorm"]

    # bf16 operands (f32 accumulation inside the kernel); flatten batch*node
    # so in-kernel matmuls see M = TB*N rows and no reshapes are needed.
    x_flat = x.reshape(B * N, in_pad).astype(jnp.bfloat16)
    h_flat = hidden.reshape(B * N, H).astype(jnp.bfloat16)
    adj_bf = norm_adj.astype(jnp.bfloat16)
    wx_all = wx_all.astype(jnp.bfloat16)
    wh_ur = wh_ur.astype(jnp.bfloat16)
    wh_c = wh_c.astype(jnp.bfloat16)

    def row_spec(c):
        return pl.BlockSpec((TB * N, c), lambda i: (i, 0))

    const2 = lambda i: (0, 0)
    const3 = lambda i: (0, 0, 0)
    in_specs = [
        row_spec(in_pad),                                # x
        row_spec(H),                                     # hidden
        pl.BlockSpec((N, N), const2),                    # norm_adj
        pl.BlockSpec((K, in_pad, 3 * H), const3),        # fused x weights
        pl.BlockSpec((K, H, 2 * H), const3),             # fused u/r h weights
        pl.BlockSpec((K, H, H), const3),                 # cell h weights
        pl.BlockSpec((1, 3 * H), const2),                # fused biases
        pl.BlockSpec((1, H), const2),                    # gamma
        pl.BlockSpec((1, H), const2),                    # beta
    ]
    out_specs = (row_spec(H), row_spec(H))
    out_shape = (jax.ShapeDtypeStruct((B * N, H), jnp.float32),
                 jax.ShapeDtypeStruct((B * N, H), jnp.float32))

    kernel = functools.partial(graphgru_kernel, n_nodes=N, batch_tile=TB,
                               hidden_dim=H)
    out_flat, next_h_flat = pl.pallas_call(
        kernel,
        grid=grid,
        in_specs=in_specs,
        out_specs=out_specs,
        out_shape=out_shape,
        compiler_params=pltpu.CompilerParams(
            dimension_semantics=("parallel",)),
    )(x_flat, h_flat, adj_bf, wx_all, wh_ur, wh_c, b_all, gamma, beta)

    return out_flat.reshape(B, N, H), next_h_flat.reshape(B, N, H)


def init_params(key, in_dim, hidden_dim):
    """Deterministic synthetic parameter init (nn.Linear-style uniform),
    pre-split per hop into x-part (K, in_dim, H) and h-part (K, H, H)."""
    params = {}
    fan_in = (GCN_DEPTH + 1) * (in_dim + hidden_dim)
    bound = 1.0 / jnp.sqrt(jnp.float32(fan_in))
    keys = jax.random.split(key, 9)
    for i, gate in enumerate(("update", "reset", "cell")):
        kx, kh, kb = keys[3 * i], keys[3 * i + 1], keys[3 * i + 2]
        wx = jax.random.uniform(kx, (GCN_DEPTH + 1, in_dim, hidden_dim),
                                jnp.float32, -bound, bound)
        wh = jax.random.uniform(kh, (GCN_DEPTH + 1, hidden_dim, hidden_dim),
                                jnp.float32, -bound, bound)
        b = jax.random.uniform(kb, (1, hidden_dim), jnp.float32, -bound, bound)
        params[gate] = (wx, wh, b)
    params["layernorm"] = (jnp.ones((1, hidden_dim), jnp.float32),
                           jnp.zeros((1, hidden_dim), jnp.float32))
    return params


def make_norm_adj(key, n):
    a = jax.random.uniform(key, (n, n), jnp.float32)
    a = 0.5 * (a + a.T) + jnp.eye(n, dtype=jnp.float32)
    return a / jnp.sum(a, axis=1, keepdims=True)   # row-normalized


if __name__ == "__main__":
    B, N, IN_DIM, HIDDEN = 2, 16, 4, 32

    key = jax.random.PRNGKey(0)
    k_x, k_h, k_adj, k_p = jax.random.split(key, 4)

    x = jax.random.normal(k_x, (B, N, IN_DIM), jnp.float32)
    hidden = jax.random.normal(k_h, (B, N, HIDDEN), jnp.float32)
    norm_adj = make_norm_adj(k_adj, N)
    params = init_params(k_p, IN_DIM, HIDDEN)

    output, next_hidden = graphgru_forward(x, hidden, norm_adj, params)
    jax.block_until_ready((output, next_hidden))

    assert output.shape == (B, N, HIDDEN)
    assert next_hidden.shape == (B, N, HIDDEN)
    print("KERNEL_OK")
</pallas_src>

<mosaic_0001>
module attributes {stable_mosaic.version = 11 : i64} {
  func.func @graphgru_kernel(%arg0: i32, %arg1: memref<32x16xbf16, #tpu.memory_space<vmem>>, %arg2: memref<32x32xbf16, #tpu.memory_space<vmem>>, %arg3: memref<16x16xbf16, #tpu.memory_space<vmem>>, %arg4: memref<3x16x96xbf16, #tpu.memory_space<vmem>>, %arg5: memref<3x32x64xbf16, #tpu.memory_space<vmem>>, %arg6: memref<3x32x32xbf16, #tpu.memory_space<vmem>>, %arg7: memref<1x96xf32, #tpu.memory_space<vmem>>, %arg8: memref<1x32xf32, #tpu.memory_space<vmem>>, %arg9: memref<1x32xf32, #tpu.memory_space<vmem>>, %arg10: memref<32x32xf32, #tpu.memory_space<vmem>>, %arg11: memref<32x32xf32, #tpu.memory_space<vmem>>) attributes {dimension_semantics = [#tpu.dimension_semantics<parallel>], iteration_bounds = array<i64: 1>, scalar_prefetch = 0 : i64, scratch_operands = 0 : i64, tpu.core_type = #tpu.core_type<tc>, window_params = [{transform_indices = @transform_0, window_bounds = array<i64: 32, 16>}, {transform_indices = @transform_1, window_bounds = array<i64: 32, 32>}, {pipeline_mode = #tpu.pipeline_mode<synchronous>, transform_indices = @transform_2, window_bounds = array<i64: 16, 16>}, {pipeline_mode = #tpu.pipeline_mode<synchronous>, transform_indices = @transform_3, window_bounds = array<i64: 3, 16, 96>}, {pipeline_mode = #tpu.pipeline_mode<synchronous>, transform_indices = @transform_4, window_bounds = array<i64: 3, 32, 64>}, {pipeline_mode = #tpu.pipeline_mode<synchronous>, transform_indices = @transform_5, window_bounds = array<i64: 3, 32, 32>}, {pipeline_mode = #tpu.pipeline_mode<synchronous>, transform_indices = @transform_6, window_bounds = array<i64: 1, 96>}, {pipeline_mode = #tpu.pipeline_mode<synchronous>, transform_indices = @transform_7, window_bounds = array<i64: 1, 32>}, {pipeline_mode = #tpu.pipeline_mode<synchronous>, transform_indices = @transform_8, window_bounds = array<i64: 1, 32>}, {transform_indices = @transform_9, window_bounds = array<i64: 32, 32>}, {transform_indices = @transform_10, window_bounds = array<i64: 32, 32>}]} {
    %c0 = arith.constant 0 : index
    %c0_0 = arith.constant 0 : index
    %0 = vector.load %arg1[%c0, %c0_0] : memref<32x16xbf16, #tpu.memory_space<vmem>>, vector<32x16xbf16>
    %c0_1 = arith.constant 0 : index
    %c0_2 = arith.constant 0 : index
    %1 = vector.load %arg2[%c0_1, %c0_2] : memref<32x32xbf16, #tpu.memory_space<vmem>>, vector<32x32xbf16>
    %c0_3 = arith.constant 0 : index
    %c0_4 = arith.constant 0 : index
    %2 = vector.load %arg3[%c0_3, %c0_4] : memref<16x16xbf16, #tpu.memory_space<vmem>>, vector<16x16xbf16>
    %3 = arith.extf %1 : vector<32x32xbf16> to vector<32x32xf32>
    %c0_5 = arith.constant 0 : index
    %c0_6 = arith.constant 0 : index
    %c0_7 = arith.constant 0 : index
    %4 = vector.load %arg4[%c0_5, %c0_6, %c0_7] : memref<3x16x96xbf16, #tpu.memory_space<vmem>>, vector<1x16x96xbf16>
    %5 = vector.shape_cast %4 : vector<1x16x96xbf16> to vector<16x96xbf16>
    %cst = arith.constant dense<0.000000e+00> : vector<32x96xf32>
    %6 = tpu.matmul %0, %5, %cst {dimension_numbers = #tpu.dot_dimension_numbers<[1], [0], [0], [1], [0, 0, 1, 1], [], []>} : vector<32x16xbf16>, vector<16x96xbf16>, vector<32x96xf32> -> vector<32x96xf32>
    %7 = arith.extf %0 : vector<32x16xbf16> to vector<32x16xf32>
    %cst_8 = arith.constant 3.000000e-01 : f32
    %8 = vector.broadcast %cst_8 : f32 to vector<32x16xf32>
    %9 = arith.mulf %8, %7 : vector<32x16xf32>
    %10 = vector.extract_strided_slice %0 {offsets = [0, 0], sizes = [16, 16], strides = [1, 1]} : vector<32x16xbf16> to vector<16x16xbf16>
    %cst_9 = arith.constant dense<0.000000e+00> : vector<16x16xf32>
    %11 = tpu.matmul %2, %10, %cst_9 {dimension_numbers = #tpu.dot_dimension_numbers<[1], [0], [0], [1], [0, 0, 1, 1], [], []>} : vector<16x16xbf16>, vector<16x16xbf16>, vector<16x16xf32> -> vector<16x16xf32>
    %12 = vector.extract_strided_slice %0 {offsets = [16, 0], sizes = [16, 16], strides = [1, 1]} : vector<32x16xbf16> to vector<16x16xbf16>
    %cst_10 = arith.constant dense<0.000000e+00> : vector<16x16xf32>
    %13 = tpu.matmul %2, %12, %cst_10 {dimension_numbers = #tpu.dot_dimension_numbers<[1], [0], [0], [1], [0, 0, 1, 1], [], []>} : vector<16x16xbf16>, vector<16x16xbf16>, vector<16x16xf32> -> vector<16x16xf32>
    %14 = tpu.concatenate %11, %13 in 0 : vector<16x16xf32>, vector<16x16xf32> -> vector<32x16xf32>
    %cst_11 = arith.constant 0.699999988 : f32
    %15 = vector.broadcast %cst_11 : f32 to vector<32x16xf32>
    %16 = arith.mulf %15, %14 : vector<32x16xf32>
    %17 = arith.addf %9, %16 : vector<32x16xf32>
    %18 = arith.truncf %17 : vector<32x16xf32> to vector<32x16xbf16>
    %c1 = arith.constant 1 : index
    %c0_12 = arith.constant 0 : index
    %c0_13 = arith.constant 0 : index
    %19 = vector.load %arg4[%c1, %c0_12, %c0_13] : memref<3x16x96xbf16, #tpu.memory_space<vmem>>, vector<1x16x96xbf16>
    %20 = vector.shape_cast %19 : vector<1x16x96xbf16> to vector<16x96xbf16>
    %cst_14 = arith.constant dense<0.000000e+00> : vector<32x96xf32>
    %21 = tpu.matmul %18, %20, %cst_14 {dimension_numbers = #tpu.dot_dimension_numbers<[1], [0], [0], [1], [0, 0, 1, 1], [], []>} : vector<32x16xbf16>, vector<16x96xbf16>, vector<32x96xf32> -> vector<32x96xf32>
    %22 = arith.addf %6, %21 : vector<32x96xf32>
    %cst_15 = arith.constant 3.000000e-01 : f32
    %23 = vector.broadcast %cst_15 : f32 to vector<32x16xf32>
    %24 = arith.mulf %23, %7 : vector<32x16xf32>
    %25 = vector.extract_strided_slice %18 {offsets = [0, 0], sizes = [16, 16], strides = [1, 1]} : vector<32x16xbf16> to vector<16x16xbf16>
    %cst_16 = arith.constant dense<0.000000e+00> : vector<16x16xf32>
    %26 = tpu.matmul %2, %25, %cst_16 {dimension_numbers = #tpu.dot_dimension_numbers<[1], [0], [0], [1], [0, 0, 1, 1], [], []>} : vector<16x16xbf16>, vector<16x16xbf16>, vector<16x16xf32> -> vector<16x16xf32>
    %27 = vector.extract_strided_slice %18 {offsets = [16, 0], sizes = [16, 16], strides = [1, 1]} : vector<32x16xbf16> to vector<16x16xbf16>
    %cst_17 = arith.constant dense<0.000000e+00> : vector<16x16xf32>
    %28 = tpu.matmul %2, %27, %cst_17 {dimension_numbers = #tpu.dot_dimension_numbers<[1], [0], [0], [1], [0, 0, 1, 1], [], []>} : vector<16x16xbf16>, vector<16x16xbf16>, vector<16x16xf32> -> vector<16x16xf32>
    %29 = tpu.concatenate %26, %28 in 0 : vector<16x16xf32>, vector<16x16xf32> -> vector<32x16xf32>
    %cst_18 = arith.constant 0.699999988 : f32
    %30 = vector.broadcast %cst_18 : f32 to vector<32x16xf32>
    %31 = arith.mulf %30, %29 : vector<32x16xf32>
    %32 = arith.addf %24, %31 : vector<32x16xf32>
    %33 = arith.truncf %32 : vector<32x16xf32> to vector<32x16xbf16>
    %c2 = arith.constant 2 : index
    %c0_19 = arith.constant 0 : index
    %c0_20 = arith.constant 0 : index
    %34 = vector.load %arg4[%c2, %c0_19, %c0_20] : memref<3x16x96xbf16, #tpu.memory_space<vmem>>, vector<1x16x96xbf16>
    %35 = vector.shape_cast %34 : vector<1x16x96xbf16> to vector<16x96xbf16>
    %cst_21 = arith.constant dense<0.000000e+00> : vector<32x96xf32>
    %36 = tpu.matmul %33, %35, %cst_21 {dimension_numbers = #tpu.dot_dimension_numbers<[1], [0], [0], [1], [0, 0, 1, 1], [], []>} : vector<32x16xbf16>, vector<16x96xbf16>, vector<32x96xf32> -> vector<32x96xf32>
    %37 = arith.addf %22, %36 : vector<32x96xf32>
    %c0_22 = arith.constant 0 : index
    %c0_23 = arith.constant 0 : index
    %38 = vector.load %arg7[%c0_22, %c0_23] : memref<1x96xf32, #tpu.memory_space<vmem>>, vector<1x96xf32>
    %39 = vector.broadcast %38 : vector<1x96xf32> to vector<32x96xf32>
    %40 = arith.addf %37, %39 : vector<32x96xf32>
    %c0_24 = arith.constant 0 : index
    %c0_25 = arith.constant 0 : index
    %c0_26 = arith.constant 0 : index
    %41 = vector.load %arg5[%c0_24, %c0_25, %c0_26] : memref<3x32x64xbf16, #tpu.memory_space<vmem>>, vector<1x32x64xbf16>
    %42 = vector.shape_cast %41 : vector<1x32x64xbf16> to vector<32x64xbf16>
    %cst_27 = arith.constant dense<0.000000e+00> : vector<32x64xf32>
    %43 = tpu.matmul %1, %42, %cst_27 {dimension_numbers = #tpu.dot_dimension_numbers<[1], [0], [0], [1], [0, 0, 1, 1], [], []>} : vector<32x32xbf16>, vector<32x64xbf16>, vector<32x64xf32> -> vector<32x64xf32>
    %44 = arith.extf %1 : vector<32x32xbf16> to vector<32x32xf32>
    %cst_28 = arith.constant 3.000000e-01 : f32
    %45 = vector.broadcast %cst_28 : f32 to vector<32x32xf32>
    %46 = arith.mulf %45, %44 : vector<32x32xf32>
    %47 = vector.extract_strided_slice %1 {offsets = [0, 0], sizes = [16, 32], strides = [1, 1]} : vector<32x32xbf16> to vector<16x32xbf16>
    %cst_29 = arith.constant dense<0.000000e+00> : vector<16x32xf32>
    %48 = tpu.matmul %2, %47, %cst_29 {dimension_numbers = #tpu.dot_dimension_numbers<[1], [0], [0], [1], [0, 0, 1, 1], [], []>} : vector<16x16xbf16>, vector<16x32xbf16>, vector<16x32xf32> -> vector<16x32xf32>
    %49 = vector.extract_strided_slice %1 {offsets = [16, 0], sizes = [16, 32], strides = [1, 1]} : vector<32x32xbf16> to vector<16x32xbf16>
    %cst_30 = arith.constant dense<0.000000e+00> : vector<16x32xf32>
    %50 = tpu.matmul %2, %49, %cst_30 {dimension_numbers = #tpu.dot_dimension_numbers<[1], [0], [0], [1], [0, 0, 1, 1], [], []>} : vector<16x16xbf16>, vector<16x32xbf16>, vector<16x32xf32> -> vector<16x32xf32>
    %51 = tpu.concatenate %48, %50 in 0 : vector<16x32xf32>, vector<16x32xf32> -> vector<32x32xf32>
    %cst_31 = arith.constant 0.699999988 : f32
    %52 = vector.broadcast %cst_31 : f32 to vector<32x32xf32>
    %53 = arith.mulf %52, %51 : vector<32x32xf32>
    %54 = arith.addf %46, %53 : vector<32x32xf32>
    %55 = arith.truncf %54 : vector<32x32xf32> to vector<32x32xbf16>
    %c1_32 = arith.constant 1 : index
    %c0_33 = arith.constant 0 : index
    %c0_34 = arith.constant 0 : index
    %56 = vector.load %arg5[%c1_32, %c0_33, %c0_34] : memref<3x32x64xbf16, #tpu.memory_space<vmem>>, vector<1x32x64xbf16>
    %57 = vector.shape_cast %56 : vector<1x32x64xbf16> to vector<32x64xbf16>
    %cst_35 = arith.constant dense<0.000000e+00> : vector<32x64xf32>
    %58 = tpu.matmul %55, %57, %cst_35 {dimension_numbers = #tpu.dot_dimension_numbers<[1], [0], [0], [1], [0, 0, 1, 1], [], []>} : vector<32x32xbf16>, vector<32x64xbf16>, vector<32x64xf32> -> vector<32x64xf32>
    %59 = arith.addf %43, %58 : vector<32x64xf32>
    %cst_36 = arith.constant 3.000000e-01 : f32
    %60 = vector.broadcast %cst_36 : f32 to vector<32x32xf32>
    %61 = arith.mulf %60, %44 : vector<32x32xf32>
    %62 = vector.extract_strided_slice %55 {offsets = [0, 0], sizes = [16, 32], strides = [1, 1]} : vector<32x32xbf16> to vector<16x32xbf16>
    %cst_37 = arith.constant dense<0.000000e+00> : vector<16x32xf32>
    %63 = tpu.matmul %2, %62, %cst_37 {dimension_numbers = #tpu.dot_dimension_numbers<[1], [0], [0], [1], [0, 0, 1, 1], [], []>} : vector<16x16xbf16>, vector<16x32xbf16>, vector<16x32xf32> -> vector<16x32xf32>
    %64 = vector.extract_strided_slice %55 {offsets = [16, 0], sizes = [16, 32], strides = [1, 1]} : vector<32x32xbf16> to vector<16x32xbf16>
    %cst_38 = arith.constant dense<0.000000e+00> : vector<16x32xf32>
    %65 = tpu.matmul %2, %64, %cst_38 {dimension_numbers = #tpu.dot_dimension_numbers<[1], [0], [0], [1], [0, 0, 1, 1], [], []>} : vector<16x16xbf16>, vector<16x32xbf16>, vector<16x32xf32> -> vector<16x32xf32>
    %66 = tpu.concatenate %63, %65 in 0 : vector<16x32xf32>, vector<16x32xf32> -> vector<32x32xf32>
    %cst_39 = arith.constant 0.699999988 : f32
    %67 = vector.broadcast %cst_39 : f32 to vector<32x32xf32>
    %68 = arith.mulf %67, %66 : vector<32x32xf32>
    %69 = arith.addf %61, %68 : vector<32x32xf32>
    %70 = arith.truncf %69 : vector<32x32xf32> to vector<32x32xbf16>
    %c2_40 = arith.constant 2 : index
    %c0_41 = arith.constant 0 : index
    %c0_42 = arith.constant 0 : index
    %71 = vector.load %arg5[%c2_40, %c0_41, %c0_42] : memref<3x32x64xbf16, #tpu.memory_space<vmem>>, vector<1x32x64xbf16>
    %72 = vector.shape_cast %71 : vector<1x32x64xbf16> to vector<32x64xbf16>
    %cst_43 = arith.constant dense<0.000000e+00> : vector<32x64xf32>
    %73 = tpu.matmul %70, %72, %cst_43 {dimension_numbers = #tpu.dot_dimension_numbers<[1], [0], [0], [1], [0, 0, 1, 1], [], []>} : vector<32x32xbf16>, vector<32x64xbf16>, vector<32x64xf32> -> vector<32x64xf32>
    %74 = arith.addf %59, %73 : vector<32x64xf32>
    %75 = vector.extract_strided_slice %40 {offsets = [0, 0], sizes = [32, 32], strides = [1, 1]} : vector<32x96xf32> to vector<32x32xf32>
    %76 = vector.extract_strided_slice %74 {offsets = [0, 0], sizes = [32, 32], strides = [1, 1]} : vector<32x64xf32> to vector<32x32xf32>
    %77 = arith.addf %75, %76 : vector<32x32xf32>
    %78 = arith.negf %77 : vector<32x32xf32>
    %79 = math.exp %78 : vector<32x32xf32>
    %cst_44 = arith.constant 1.000000e+00 : f32
    %80 = vector.broadcast %cst_44 : f32 to vector<32x32xf32>
    %81 = arith.addf %80, %79 : vector<32x32xf32>
    %82 = arith.divf %80, %81 : vector<32x32xf32>
    %83 = vector.extract_strided_slice %40 {offsets = [0, 32], sizes = [32, 32], strides = [1, 1]} : vector<32x96xf32> to vector<32x32xf32>
    %84 = vector.extract_strided_slice %74 {offsets = [0, 32], sizes = [32, 32], strides = [1, 1]} : vector<32x64xf32> to vector<32x32xf32>
    %85 = arith.addf %83, %84 : vector<32x32xf32>
    %86 = arith.negf %85 : vector<32x32xf32>
    %87 = math.exp %86 : vector<32x32xf32>
    %cst_45 = arith.constant 1.000000e+00 : f32
    %88 = vector.broadcast %cst_45 : f32 to vector<32x32xf32>
    %89 = arith.addf %88, %87 : vector<32x32xf32>
    %90 = arith.divf %88, %89 : vector<32x32xf32>
    %91 = arith.mulf %90, %3 : vector<32x32xf32>
    %92 = arith.truncf %91 : vector<32x32xf32> to vector<32x32xbf16>
    %93 = vector.extract_strided_slice %40 {offsets = [0, 64], sizes = [32, 32], strides = [1, 1]} : vector<32x96xf32> to vector<32x32xf32>
    %c0_46 = arith.constant 0 : index
    %c0_47 = arith.constant 0 : index
    %c0_48 = arith.constant 0 : index
    %94 = vector.load %arg6[%c0_46, %c0_47, %c0_48] : memref<3x32x32xbf16, #tpu.memory_space<vmem>>, vector<1x32x32xbf16>
    %95 = vector.shape_cast %94 : vector<1x32x32xbf16> to vector<32x32xbf16>
    %cst_49 = arith.constant dense<0.000000e+00> : vector<32x32xf32>
    %96 = tpu.matmul %92, %95, %cst_49 {dimension_numbers = #tpu.dot_dimension_numbers<[1], [0], [0], [1], [0, 0, 1, 1], [], []>} : vector<32x32xbf16>, vector<32x32xbf16>, vector<32x32xf32> -> vector<32x32xf32>
    %97 = arith.extf %92 : vector<32x32xbf16> to vector<32x32xf32>
    %cst_50 = arith.constant 3.000000e-01 : f32
    %98 = vector.broadcast %cst_50 : f32 to vector<32x32xf32>
    %99 = arith.mulf %98, %97 : vector<32x32xf32>
    %100 = vector.extract_strided_slice %92 {offsets = [0, 0], sizes = [16, 32], strides = [1, 1]} : vector<32x32xbf16> to vector<16x32xbf16>
    %cst_51 = arith.constant dense<0.000000e+00> : vector<16x32xf32>
    %101 = tpu.matmul %2, %100, %cst_51 {dimension_numbers = #tpu.dot_dimension_numbers<[1], [0], [0], [1], [0, 0, 1, 1], [], []>} : vector<16x16xbf16>, vector<16x32xbf16>, vector<16x32xf32> -> vector<16x32xf32>
    %102 = vector.extract_strided_slice %92 {offsets = [16, 0], sizes = [16, 32], strides = [1, 1]} : vector<32x32xbf16> to vector<16x32xbf16>
    %cst_52 = arith.constant dense<0.000000e+00> : vector<16x32xf32>
    %103 = tpu.matmul %2, %102, %cst_52 {dimension_numbers = #tpu.dot_dimension_numbers<[1], [0], [0], [1], [0, 0, 1, 1], [], []>} : vector<16x16xbf16>, vector<16x32xbf16>, vector<16x32xf32> -> vector<16x32xf32>
    %104 = tpu.concatenate %101, %103 in 0 : vector<16x32xf32>, vector<16x32xf32> -> vector<32x32xf32>
    %cst_53 = arith.constant 0.699999988 : f32
    %105 = vector.broadcast %cst_53 : f32 to vector<32x32xf32>
    %106 = arith.mulf %105, %104 : vector<32x32xf32>
    %107 = arith.addf %99, %106 : vector<32x32xf32>
    %108 = arith.truncf %107 : vector<32x32xf32> to vector<32x32xbf16>
    %c1_54 = arith.constant 1 : index
    %c0_55 = arith.constant 0 : index
    %c0_56 = arith.constant 0 : index
    %109 = vector.load %arg6[%c1_54, %c0_55, %c0_56] : memref<3x32x32xbf16, #tpu.memory_space<vmem>>, vector<1x32x32xbf16>
    %110 = vector.shape_cast %109 : vector<1x32x32xbf16> to vector<32x32xbf16>
    %cst_57 = arith.constant dense<0.000000e+00> : vector<32x32xf32>
    %111 = tpu.matmul %108, %110, %cst_57 {dimension_numbers = #tpu.dot_dimension_numbers<[1], [0], [0], [1], [0, 0, 1, 1], [], []>} : vector<32x32xbf16>, vector<32x32xbf16>, vector<32x32xf32> -> vector<32x32xf32>
    %112 = arith.addf %96, %111 : vector<32x32xf32>
    %cst_58 = arith.constant 3.000000e-01 : f32
    %113 = vector.broadcast %cst_58 : f32 to vector<32x32xf32>
    %114 = arith.mulf %113, %97 : vector<32x32xf32>
    %115 = vector.extract_strided_slice %108 {offsets = [0, 0], sizes = [16, 32], strides = [1, 1]} : vector<32x32xbf16> to vector<16x32xbf16>
    %cst_59 = arith.constant dense<0.000000e+00> : vector<16x32xf32>
    %116 = tpu.matmul %2, %115, %cst_59 {dimension_numbers = #tpu.dot_dimension_numbers<[1], [0], [0], [1], [0, 0, 1, 1], [], []>} : vector<16x16xbf16>, vector<16x32xbf16>, vector<16x32xf32> -> vector<16x32xf32>
    %117 = vector.extract_strided_slice %108 {offsets = [16, 0], sizes = [16, 32], strides = [1, 1]} : vector<32x32xbf16> to vector<16x32xbf16>
    %cst_60 = arith.constant dense<0.000000e+00> : vector<16x32xf32>
    %118 = tpu.matmul %2, %117, %cst_60 {dimension_numbers = #tpu.dot_dimension_numbers<[1], [0], [0], [1], [0, 0, 1, 1], [], []>} : vector<16x16xbf16>, vector<16x32xbf16>, vector<16x32xf32> -> vector<16x32xf32>
    %119 = tpu.concatenate %116, %118 in 0 : vector<16x32xf32>, vector<16x32xf32> -> vector<32x32xf32>
    %cst_61 = arith.constant 0.699999988 : f32
    %120 = vector.broadcast %cst_61 : f32 to vector<32x32xf32>
    %121 = arith.mulf %120, %119 : vector<32x32xf32>
    %122 = arith.addf %114, %121 : vector<32x32xf32>
    %123 = arith.truncf %122 : vector<32x32xf32> to vector<32x32xbf16>
    %c2_62 = arith.constant 2 : index
    %c0_63 = arith.constant 0 : index
    %c0_64 = arith.constant 0 : index
    %124 = vector.load %arg6[%c2_62, %c0_63, %c0_64] : memref<3x32x32xbf16, #tpu.memory_space<vmem>>, vector<1x32x32xbf16>
    %125 = vector.shape_cast %124 : vector<1x32x32xbf16> to vector<32x32xbf16>
    %cst_65 = arith.constant dense<0.000000e+00> : vector<32x32xf32>
    %126 = tpu.matmul %123, %125, %cst_65 {dimension_numbers = #tpu.dot_dimension_numbers<[1], [0], [0], [1], [0, 0, 1, 1], [], []>} : vector<32x32xbf16>, vector<32x32xbf16>, vector<32x32xf32> -> vector<32x32xf32>
    %127 = arith.addf %112, %126 : vector<32x32xf32>
    %128 = arith.addf %93, %127 : vector<32x32xf32>
    %129 = math.tanh %128 : vector<32x32xf32>
    %130 = arith.mulf %82, %3 : vector<32x32xf32>
    %cst_66 = arith.constant 1.000000e+00 : f32
    %131 = vector.broadcast %cst_66 : f32 to vector<32x32xf32>
    %132 = arith.subf %131, %82 : vector<32x32xf32>
    %133 = arith.mulf %132, %129 : vector<32x32xf32>
    %134 = arith.addf %130, %133 : vector<32x32xf32>
    %cst_67 = arith.constant dense<0.000000e+00> : vector<32xf32>
    %135 = vector.multi_reduction <add>, %134, %cst_67 [1] : vector<32x32xf32> to vector<32xf32>
    %136 = vector.shape_cast %135 : vector<32xf32> to vector<32x1xf32>
    %cst_68 = arith.constant 3.200000e+01 : f32
    %137 = vector.broadcast %cst_68 : f32 to vector<32x1xf32>
    %138 = arith.divf %136, %137 : vector<32x1xf32>
    %139 = vector.broadcast %138 : vector<32x1xf32> to vector<32x32xf32>
    %140 = arith.subf %134, %139 : vector<32x32xf32>
    %141 = arith.mulf %140, %140 : vector<32x32xf32>
    %cst_69 = arith.constant dense<0.000000e+00> : vector<32xf32>
    %142 = vector.multi_reduction <add>, %141, %cst_69 [1] : vector<32x32xf32> to vector<32xf32>
    %143 = vector.shape_cast %142 : vector<32xf32> to vector<32x1xf32>
    %cst_70 = arith.constant 3.200000e+01 : f32
    %144 = vector.broadcast %cst_70 : f32 to vector<32x1xf32>
    %145 = arith.divf %143, %144 : vector<32x1xf32>
    %146 = vector.broadcast %138 : vector<32x1xf32> to vector<32x32xf32>
    %147 = arith.subf %134, %146 : vector<32x32xf32>
    %cst_71 = arith.constant 9.99999974E-6 : f32
    %148 = vector.broadcast %cst_71 : f32 to vector<32x1xf32>
    %149 = arith.addf %145, %148 : vector<32x1xf32>
    %150 = math.rsqrt %149 : vector<32x1xf32>
    %151 = vector.broadcast %150 : vector<32x1xf32> to vector<32x32xf32>
    %152 = arith.mulf %147, %151 : vector<32x32xf32>
    %c0_72 = arith.constant 0 : index
    %c0_73 = arith.constant 0 : index
    %153 = vector.load %arg8[%c0_72, %c0_73] : memref<1x32xf32, #tpu.memory_space<vmem>>, vector<1x32xf32>
    %154 = vector.broadcast %153 : vector<1x32xf32> to vector<32x32xf32>
    %155 = arith.mulf %152, %154 : vector<32x32xf32>
    %c0_74 = arith.constant 0 : index
    %c0_75 = arith.constant 0 : index
    %156 = vector.load %arg9[%c0_74, %c0_75] : memref<1x32xf32, #tpu.memory_space<vmem>>, vector<1x32xf32>
    %157 = vector.broadcast %156 : vector<1x32xf32> to vector<32x32xf32>
    %158 = arith.addf %155, %157 : vector<32x32xf32>
    %c0_76 = arith.constant 0 : index
    %c0_77 = arith.constant 0 : index
    %159 = vector.load %arg10[%c0_76, %c0_77] : memref<32x32xf32, #tpu.memory_space<vmem>>, vector<32x32xf32>
    tpu.vector_store %arg10[%c0_76, %c0_77], %158 {strides = array<i32>} : memref<32x32xf32, #tpu.memory_space<vmem>>, vector<32x32xf32>,
    %cst_78 = arith.constant 3.000000e-01 : f32
    %160 = vector.broadcast %cst_78 : f32 to vector<32x32xf32>
    %161 = arith.mulf %160, %3 : vector<32x32xf32>
    %cst_79 = arith.constant 0.699999988 : f32
    %162 = vector.broadcast %cst_79 : f32 to vector<32x32xf32>
    %163 = arith.mulf %162, %158 : vector<32x32xf32>
    %164 = arith.addf %161, %163 : vector<32x32xf32>
    %c0_80 = arith.constant 0 : index
    %c0_81 = arith.constant 0 : index
    %165 = vector.load %arg11[%c0_80, %c0_81] : memref<32x32xf32, #tpu.memory_space<vmem>>, vector<32x32xf32>
    tpu.vector_store %arg11[%c0_80, %c0_81], %164 {strides = array<i32>} : memref<32x32xf32, #tpu.memory_space<vmem>>, vector<32x32xf32>,
    return
  }
  func.func @transform_0(%arg0: i32) -> (i32, i32) {
    %c0_i32 = arith.constant 0 : i32
    %c0_i32_0 = arith.constant 0 : i32
    return %arg0, %c0_i32 : i32, i32
  }
  func.func @transform_1(%arg0: i32) -> (i32, i32) {
    %c0_i32 = arith.constant 0 : i32
    %c0_i32_0 = arith.constant 0 : i32
    return %arg0, %c0_i32 : i32, i32
  }
  func.func @transform_2(%arg0: i32) -> (i32, i32) {
    %c0_i32 = arith.constant 0 : i32
    %c0_i32_0 = arith.constant 0 : i32
    %c0_i32_1 = arith.constant 0 : i32
    return %c0_i32, %c0_i32_0 : i32, i32
  }
  func.func @transform_3(%arg0: i32) -> (i32, i32, i32) {
    %c0_i32 = arith.constant 0 : i32
    %c0_i32_0 = arith.constant 0 : i32
    %c0_i32_1 = arith.constant 0 : i32
    %c0_i32_2 = arith.constant 0 : i32
    return %c0_i32, %c0_i32_0, %c0_i32_1 : i32, i32, i32
  }
  func.func @transform_4(%arg0: i32) -> (i32, i32, i32) {
    %c0_i32 = arith.constant 0 : i32
    %c0_i32_0 = arith.constant 0 : i32
    %c0_i32_1 = arith.constant 0 : i32
    %c0_i32_2 = arith.constant 0 : i32
    return %c0_i32, %c0_i32_0, %c0_i32_1 : i32, i32, i32
  }
  func.func @transform_5(%arg0: i32) -> (i32, i32, i32) {
    %c0_i32 = arith.constant 0 : i32
    %c0_i32_0 = arith.constant 0 : i32
    %c0_i32_1 = arith.constant 0 : i32
    %c0_i32_2 = arith.constant 0 : i32
    return %c0_i32, %c0_i32_0, %c0_i32_1 : i32, i32, i32
  }
  func.func @transform_6(%arg0: i32) -> (i32, i32) {
    %c0_i32 = arith.constant 0 : i32
    %c0_i32_0 = arith.constant 0 : i32
    %c0_i32_1 = arith.constant 0 : i32
    return %c0_i32, %c0_i32_0 : i32, i32
  }
  func.func @transform_7(%arg0: i32) -> (i32, i32) {
    %c0_i32 = arith.constant 0 : i32
    %c0_i32_0 = arith.constant 0 : i32
    %c0_i32_1 = arith.constant 0 : i32
    return %c0_i32, %c0_i32_0 : i32, i32
  }
  func.func @transform_8(%arg0: i32) -> (i32, i32) {
    %c0_i32 = arith.constant 0 : i32
    %c0_i32_0 = arith.constant 0 : i32
    %c0_i32_1 = arith.constant 0 : i32
    return %c0_i32, %c0_i32_0 : i32, i32
  }
  func.func @transform_9(%arg0: i32) -> (i32, i32) {
    %c0_i32 = arith.constant 0 : i32
    %c0_i32_0 = arith.constant 0 : i32
    return %arg0, %c0_i32 : i32, i32
  }
  func.func @transform_10(%arg0: i32) -> (i32, i32) {
    %c0_i32 = arith.constant 0 : i32
    %c0_i32_0 = arith.constant 0 : i32
    return %arg0, %c0_i32 : i32, i32
  }
}

</mosaic_0001>

<llo_original>
// kernel: tpu_custom_call.1
$region0: #{tpu_custom_call.1}
  #allocation0 [shape = 'u32[]', space=smem, size = 0x4, offset = 0x4, fixed_abs, tag = 'smem constant byte address 0x4 - core index']
  #allocation1 [shape = 'u32[144,128]{1,0:T(1,128)}', space=vmem, size = 0x12000, scoped, tag = 'internal scratch']
  %s0 = inlined_call_operand.vmem [shape: bf16[32,16], index: 0, kind: input, shape index: {}]
  %s1 = inlined_call_operand.hbm [shape: bf16[32,32], index: 1, kind: input, shape index: {}]
  %s2 = inlined_call_operand.vmem [shape: bf16[16,16], index: 2, kind: input, shape index: {}]
  %s3 = inlined_call_operand.vmem [shape: bf16[3,16,96], index: 3, kind: input, shape index: {}]
  %s4 = inlined_call_operand.hbm [shape: bf16[3,32,64], index: 4, kind: input, shape index: {}]
  %s5 = inlined_call_operand.hbm [shape: bf16[3,32,32], index: 5, kind: input, shape index: {}]
  %s6 = inlined_call_operand.vmem [shape: f32[1,96], index: 6, kind: input, shape index: {}]
  %s7 = inlined_call_operand.vmem [shape: f32[1,32], index: 7, kind: input, shape index: {}]
  %s8 = inlined_call_operand.vmem [shape: f32[1,32], index: 8, kind: input, shape index: {}]
  %s9 = inlined_call_operand.hbm [shape: f32[32,32], index: 9, kind: output, shape index: {0}]
  %s10 = inlined_call_operand.hbm [shape: f32[32,32], index: 10, kind: output, shape index: {1}]
  %11 = xla_tuple %s9, %s10
  %s12 = sld [smem:[#allocation0]]
  $region66: #{tpu_custom_call.1} parent=0
    _
  %s14 = ssub.s32 1, %s12
  %s15 = scalar_select 0, %s14, %s12
  $region1: #{tpu_custom_call.1} parent=0
    #allocation2 [shape = 'u8[8192]{0}', space=vmem, size = 0x2000, scoped, tag = 'input window, operand 1, single buffered']
    #allocation3 [shape = 's32[1]{0}', space=sflag, size = 0x4, scoped, tag = 'scoped memory for tpu_custom_call.1']
    #allocation4 [shape = 's32[1]{0}', space=sflag, size = 0x4, scoped, tag = 'scoped memory for tpu_custom_call.1']
    #allocation5 [shape = 'u8[24576]{0}', space=vmem, size = 0x6000, scoped, tag = 'input window, operand 4, single buffered']
    #allocation6 [shape = 's32[1]{0}', space=sflag, size = 0x4, scoped, tag = 'scoped memory for tpu_custom_call.1']
    #allocation7 [shape = 'u8[24576]{0}', space=vmem, size = 0x6000, scoped, tag = 'input window, operand 5, single buffered']
    #allocation8 [shape = 'u8[16384]{0}', space=vmem, size = 0x4000, scoped, tag = 'output window, operand 0, single buffered']
    #allocation9 [shape = 'u8[16384]{0}', space=vmem, size = 0x4000, scoped, tag = 'output window, operand 1, single buffered']
    #allocation10 [shape = 's32[1]{0}', space=sflag, size = 0x4, scoped, tag = 'scoped memory for tpu_custom_call.1']
    %16 = vsyncpa [#allocation3], 0
    %17 = vsyncpa [#allocation6], 0
    %18 = vsyncpa [#allocation4], 0
    %19 = vsyncpa [#allocation10], 0
    // Predicated region
    $region2: #{tpu_custom_call.1} parent=1 // pred_check
      _
    $region3: #{tpu_custom_call.1} parent=1 // pred_check_branch
      %21 = sbr.rel (0) target = $region5
    $region4: #{tpu_custom_call.1} parent=1 // pred_region
      _
    $region5: #{tpu_custom_call.1} parent=1 // pred_fallthru
      _
    // Predicated region
    $region6: #{tpu_custom_call.1} parent=1 // pred_check
      _
    $region7: #{tpu_custom_call.1} parent=1 // pred_check_branch
      %23 = sbr.rel (0) target = $region9
    $region8: #{tpu_custom_call.1} parent=1 // pred_region
      %s25 = ssub.s32 256, 256
      %26 = vsyncadd [#allocation3], %s25
      %s27 = sshll.u32 [#allocation2], 4
      %s28 = int_to_ptr.vmem [resolvable:$true] %s27
      %33 = dma.hbm_to_vmem [thread:$0]  %s1, 256, %s28, [#allocation3], 64, 64, 4
    $region9: #{tpu_custom_call.1} parent=1 // pred_fallthru
      _
    // Predicated region
    $region10: #{tpu_custom_call.1} parent=1 // pred_check
      _
    $region11: #{tpu_custom_call.1} parent=1 // pred_check_branch
      %35 = sbr.rel (0) target = $region13
    $region12: #{tpu_custom_call.1} parent=1 // pred_region
      _
    $region13: #{tpu_custom_call.1} parent=1 // pred_fallthru
      _
    // Predicated region
    $region14: #{tpu_custom_call.1} parent=1 // pred_check
      _
    $region15: #{tpu_custom_call.1} parent=1 // pred_check_branch
      %37 = sbr.rel (0) target = $region17
    $region16: #{tpu_custom_call.1} parent=1 // pred_region
      _
    $region17: #{tpu_custom_call.1} parent=1 // pred_fallthru
      _
    // Predicated region
    $region18: #{tpu_custom_call.1} parent=1 // pred_check
      _
    $region19: #{tpu_custom_call.1} parent=1 // pred_check_branch
      %39 = sbr.rel (0) target = $region21
    $region20: #{tpu_custom_call.1} parent=1 // pred_region
      %s41 = ssub.s32 768, 768
      %42 = vsyncadd [#allocation6], %s41
      %s43 = sshll.u32 [#allocation5], 4
      %s44 = int_to_ptr.vmem [resolvable:$true] %s43
      %49 = dma.hbm_to_vmem [thread:$0]  %s4, 768, %s44, [#allocation6], 64, 64, 4
    $region21: #{tpu_custom_call.1} parent=1 // pred_fallthru
      _
    // Predicated region
    $region22: #{tpu_custom_call.1} parent=1 // pred_check
      _
    $region23: #{tpu_custom_call.1} parent=1 // pred_check_branch
      %51 = sbr.rel (0) target = $region25
    $region24: #{tpu_custom_call.1} parent=1 // pred_region
      %s53 = ssub.s32 768, 768
      %54 = vsyncadd [#allocation6], %s53
      %s55 = sshll.u32 [#allocation7], 4
      %s56 = int_to_ptr.vmem [resolvable:$true] %s55
      %61 = dma.hbm_to_vmem [thread:$0]  %s5, 768, %s56, [#allocation6], 64, 64, 4
    $region25: #{tpu_custom_call.1} parent=1 // pred_fallthru
      _
    // Predicated region
    $region26: #{tpu_custom_call.1} parent=1 // pred_check
      _
    $region27: #{tpu_custom_call.1} parent=1 // pred_check_branch
      %63 = sbr.rel (0) target = $region29
    $region28: #{tpu_custom_call.1} parent=1 // pred_region
      _
    $region29: #{tpu_custom_call.1} parent=1 // pred_fallthru
      _
    // Predicated region
    $region30: #{tpu_custom_call.1} parent=1 // pred_check
      _
    $region31: #{tpu_custom_call.1} parent=1 // pred_check_branch
      %65 = sbr.rel (0) target = $region33
    $region32: #{tpu_custom_call.1} parent=1 // pred_region
      _
    $region33: #{tpu_custom_call.1} parent=1 // pred_fallthru
      _
    // Predicated region
    $region34: #{tpu_custom_call.1} parent=1 // pred_check
      _
    $region35: #{tpu_custom_call.1} parent=1 // pred_check_branch
      %67 = sbr.rel (0) target = $region37
    $region36: #{tpu_custom_call.1} parent=1 // pred_region
      _
    $region37: #{tpu_custom_call.1} parent=1 // pred_fallthru
      _
    // Predicated region
    $region38: #{tpu_custom_call.1} parent=1 // pred_check
      _
    $region39: #{tpu_custom_call.1} parent=1 // pred_check_branch
      %69 = sbr.rel (0) target = $region41
    $region40: #{tpu_custom_call.1} parent=1 // pred_region
      %70 = dma.done [#allocation3], 256
    $region41: #{tpu_custom_call.1} parent=1 // pred_fallthru
      _
    // Predicated region
    $region42: #{tpu_custom_call.1} parent=1 // pred_check
      _
    $region43: #{tpu_custom_call.1} parent=1 // pred_check_branch
      %72 = sbr.rel (0) target = $region45
    $region44: #{tpu_custom_call.1} parent=1 // pred_region
      %73 = dma.done [#allocation6], 768
    $region45: #{tpu_custom_call.1} parent=1 // pred_fallthru
      _
    // Predicated region
    $region46: #{tpu_custom_call.1} parent=1 // pred_check
      _
    $region47: #{tpu_custom_call.1} parent=1 // pred_check_branch
      %75 = sbr.rel (0) target = $region49
    $region48: #{tpu_custom_call.1} parent=1 // pred_region
      %76 = dma.done [#allocation6], 768
    $region49: #{tpu_custom_call.1} parent=1 // pred_fallthru
      _
    %v78 = vld [vmem:[%s0] sm:$0xf]
    %v79 = vld [vmem:[%s0 + $0x4] sm:$0xf]
    %v80 = vld [vmem:[%s0 + $0x8] sm:$0xf]
    %v81 = vld [vmem:[%s0 + $0xc] sm:$0xf]
    %v82 = vld [vmem:[#allocation2] sm:$0xf]
    %v83 = vld [vmem:[#allocation2 + $0x4] sm:$0xf]
    %v84 = vld [vmem:[#allocation2 + $0x8] sm:$0xf]
    %v85 = vld [vmem:[#allocation2 + $0xc] sm:$0xf]
    %v86 = vld [vmem:[%s2] sm:$0xf]
    %v87 = vld [vmem:[%s2 + $0x4] sm:$0xf]
    %v88 = vunpack.c.l.bf16 %v82
    %v89 = vunpack.c.l.bf16 %v83
    %v90 = vunpack.c.l.bf16 %v84
    %v91 = vunpack.c.l.bf16 %v85
    %v92 = vld [vmem:[%s3] sm:$0xf]
    %v93 = vld [vmem:[%s3 + $0x4] sm:$0xf]
    %v94 = vunpack.c.l.bf16 %v78
    %v95 = vunpack.c.l.bf16 %v79
    %v96 = vunpack.c.l.bf16 %v80
    %v97 = vunpack.c.l.bf16 %v81
    %v98 = vmul.f32 %v94, 0.3
    %v99 = vmul.f32 %v95, 0.3
    %v100 = vmul.f32 %v96, 0.3
    %v101 = vmul.f32 %v97, 0.3
    %v104 = vunpack.c.l.b16 %v86
    %v105 = vunpack.c.l.b16 %v87
    %v106 = vpack.c.b16 %v105, %v104
    %v109 = vunpack.c.l.b16 %v78
    %v110 = vunpack.c.l.b16 %v79
    %v111 = vpack.c.b16 %v110, %v109
    %vm113 = vcmask 130048
    %v115 = vsel %vm113, %v106, 0
    %117 = vmatprep.subr.bf16.mxu0 0
    %118 = vmatpush1.bf16.msra.mxu0 %v111
    %119 = vmatprep.subr.bf16.mxu0 0
    %120 = vmatpush1.bf16.msra.mxu0 0
    %121 = vmatprep.subr.bf16.mxu0 0
    %122 = vmatpush1.bf16.msra.mxu0 0
    %123 = vmatprep.subr.bf16.mxu0 0
    %124 = vmatpush1.bf16.msra.mxu0 0
    %125 = vmatprep.subr.bf16.mxu0 0
    %126 = vmatpush1.bf16.msra.mxu0 0
    %127 = vmatprep.subr.bf16.mxu0 0
    %128 = vmatpush1.bf16.msra.mxu0 0
    %129 = vmatprep.subr.bf16.mxu0 0
    %130 = vmatpush1.bf16.msra.mxu0 0
    %131 = vmatprep.subr.bf16.mxu0 0
    %132 = vmatpush1.bf16.msra.mxu0 0
    %133 = vmatprep.subr.bf16.mxu0 0
    %134 = vmatpush1.bf16.msra.mxu0 0
    %135 = vmatprep.subr.bf16.mxu0 0
    %136 = vmatpush1.bf16.msra.mxu0 0
    %137 = vmatprep.subr.bf16.mxu0 0
    %138 = vmatpush1.bf16.msra.mxu0 0
    %139 = vmatprep.subr.bf16.mxu0 0
    %140 = vmatpush1.bf16.msra.mxu0 0
    %141 = vmatprep.subr.bf16.mxu0 0
    %142 = vmatpush1.bf16.msra.mxu0 0
    %143 = vmatprep.subr.bf16.mxu0 0
    %144 = vmatpush1.bf16.msra.mxu0 0
    %145 = vmatprep.subr.bf16.mxu0 0
    %146 = vmatpush1.bf16.msra.mxu0 0
    %147 = vmatprep.subr.bf16.mxu0 0
    %148 = vmatpush1.bf16.msra.mxu0 0
    %149 = vmatprep.mubr.bf16.mxu0 0
    %150 = vmatmul.mubr.bf16.gmra.mrb[0].mxu0 %v115
    %v151 = vpop.f32.mrb[0].mxu0
    %v152 = vadd.f32 0.0, %v151
    %v153 = vpop.f32.mrb[0].mxu0
    %v154 = vpop.f32.mrb[0].mxu0
    %v155 = vadd.f32 0.0, %v154
    %v156 = vpop.f32.mrb[0].mxu0
    %157 = vdwg.mxu0
    %v160 = vunpack.c.l.b16 %v80
    %v161 = vunpack.c.l.b16 %v81
    %v162 = vpack.c.b16 %v161, %v160
    %164 = vmatprep.subr.bf16.mxu0 0
    %165 = vmatpush1.bf16.msra.mxu0 %v162
    %166 = vmatprep.subr.bf16.mxu0 0
    %167 = vmatpush1.bf16.msra.mxu0 0
    %168 = vmatprep.subr.bf16.mxu0 0
    %169 = vmatpush1.bf16.msra.mxu0 0
    %170 = vmatprep.subr.bf16.mxu0 0
    %171 = vmatpush1.bf16.msra.mxu0 0
    %172 = vmatprep.subr.bf16.mxu0 0
    %173 = vmatpush1.bf16.msra.mxu0 0
    %174 = vmatprep.subr.bf16.mxu0 0
    %175 = vmatpush1.bf16.msra.mxu0 0
    %176 = vmatprep.subr.bf16.mxu0 0
    %177 = vmatpush1.bf16.msra.mxu0 0
    %178 = vmatprep.subr.bf16.mxu0 0
    %179 = vmatpush1.bf16.msra.mxu0 0
    %180 = vmatprep.subr.bf16.mxu0 0
    %181 = vmatpush1.bf16.msra.mxu0 0
    %182 = vmatprep.subr.bf16.mxu0 0
    %183 = vmatpush1.bf16.msra.mxu0 0
    %184 = vmatprep.subr.bf16.mxu0 0
    %185 = vmatpush1.bf16.msra.mxu0 0
    %186 = vmatprep.subr.bf16.mxu0 0
    %187 = vmatpush1.bf16.msra.mxu0 0
    %188 = vmatprep.subr.bf16.mxu0 0
    %189 = vmatpush1.bf16.msra.mxu0 0
    %190 = vmatprep.subr.bf16.mxu0 0
    %191 = vmatpush1.bf16.msra.mxu0 0
    %192 = vmatprep.subr.bf16.mxu0 0
    %193 = vmatpush1.bf16.msra.mxu0 0
    %194 = vmatprep.subr.bf16.mxu0 0
    %195 = vmatpush1.bf16.msra.mxu0 0
    %196 = vmatprep.mubr.bf16.mxu0 0
    %197 = vmatmul.mubr.bf16.gmra.mrb[0].mxu0 %v115
    %v198 = vpop.f32.mrb[0].mxu0
    %v199 = vadd.f32 0.0, %v198
    %v200 = vpop.f32.mrb[0].mxu0
    %v201 = vpop.f32.mrb[0].mxu0
    %v202 = vadd.f32 0.0, %v201
    %v203 = vpop.f32.mrb[0].mxu0
    %204 = vdwg.mxu0
    %v205 = vmul.f32 %v152, 0.7
    %v206 = vmul.f32 %v155, 0.7
    %v207 = vmul.f32 %v199, 0.7
    %v208 = vmul.f32 %v202, 0.7
    %v209 = vadd.f32 %v98, %v205
    %v210 = vadd.f32 %v99, %v206
    %v211 = vadd.f32 %v100, %v207
    %v212 = vadd.f32 %v101, %v208
    %v213 = vpack.c.bf16 %v210, %v209
    %v214 = vpack.c.bf16 %v212, %v211
    %s215 = scalar_lea.vmem %s3, 8
    %v216 = vld [vmem:[%s215] sm:$0xf]
    %v217 = vld [vmem:[%s215 + $0x4] sm:$0xf]
    %v220 = vunpack.c.l.b16 %v216
    %v221 = vunpack.c.l.b16 %v217
    %v222 = vpack.c.b16 %v221, %v220
    %v225 = vsel %vm113, %v213, 0
    %v228 = vsel %vm113, %v214, 0
    %230 = vmatprep.subr.bf16.mxu0 0
    %231 = vmatpush1.bf16.msra.mxu0 %v222
    %232 = vmatprep.subr.bf16.mxu0 0
    %233 = vmatpush1.bf16.msra.mxu0 0
    %234 = vmatprep.subr.bf16.mxu0 0
    %235 = vmatpush1.bf16.msra.mxu0 0
    %236 = vmatprep.subr.bf16.mxu0 0
    %237 = vmatpush1.bf16.msra.mxu0 0
    %238 = vmatprep.subr.bf16.mxu0 0
    %239 = vmatpush1.bf16.msra.mxu0 0
    %240 = vmatprep.subr.bf16.mxu0 0
    %241 = vmatpush1.bf16.msra.mxu0 0
    %242 = vmatprep.subr.bf16.mxu0 0
    %243 = vmatpush1.bf16.msra.mxu0 0
    %244 = vmatprep.subr.bf16.mxu0 0
    %245 = vmatpush1.bf16.msra.mxu0 0
    %246 = vmatprep.subr.bf16.mxu0 0
    %247 = vmatpush1.bf16.msra.mxu0 0
    %248 = vmatprep.subr.bf16.mxu0 0
    %249 = vmatpush1.bf16.msra.mxu0 0
    %250 = vmatprep.subr.bf16.mxu0 0
    %251 = vmatpush1.bf16.msra.mxu0 0
    %252 = vmatprep.subr.bf16.mxu0 0
    %253 = vmatpush1.bf16.msra.mxu0 0
    %254 = vmatprep.subr.bf16.mxu0 0
    %255 = vmatpush1.bf16.msra.mxu0 0
    %256 = vmatprep.subr.bf16.mxu0 0
    %257 = vmatpush1.bf16.msra.mxu0 0
    %258 = vmatprep.subr.bf16.mxu0 0
    %259 = vmatpush1.bf16.msra.mxu0 0
    %260 = vmatprep.subr.bf16.mxu0 0
    %261 = vmatpush1.bf16.msra.mxu0 0
    %262 = vmatprep.mubr.bf16.mxu0 0
    %263 = vmatmul.mubr.bf16.gmra.mrb[0].mxu0 %v225
    %v264 = vpop.f32.mrb[0].mxu0
    %v265 = vadd.f32 0.0, %v264
    %v266 = vpop.f32.mrb[0].mxu0
    %v267 = vpop.f32.mrb[0].mxu0
    %v268 = vadd.f32 0.0, %v267
    %v269 = vpop.f32.mrb[0].mxu0
    %270 = vmatprep.mubr.bf16.mxu0 0
    %271 = vmatmul.mubr.bf16.gmra.mrb[0].mxu0 %v228
    %v272 = vpop.f32.mrb[0].mxu0
    %v273 = vadd.f32 0.0, %v272
    %v274 = vpop.f32.mrb[0].mxu0
    %v275 = vpop.f32.mrb[0].mxu0
    %v276 = vadd.f32 0.0, %v275
    %v277 = vpop.f32.mrb[0].mxu0
    %278 = vdwg.mxu0
    %v281 = vunpack.c.l.b16 %v92
    %v282 = vunpack.c.l.b16 %v93
    %v283 = vpack.c.b16 %v282, %v281
    %v286 = vsel %vm113, %v111, 0
    %v289 = vsel %vm113, %v162, 0
    %291 = vmatprep.subr.bf16.mxu0 0
    %292 = vmatpush1.bf16.msra.mxu0 %v283
    %293 = vmatprep.subr.bf16.mxu0 0
    %294 = vmatpush1.bf16.msra.mxu0 0
    %295 = vmatprep.subr.bf16.mxu0 0
    %296 = vmatpush1.bf16.msra.mxu0 0
    %297 = vmatprep.subr.bf16.mxu0 0
    %298 = vmatpush1.bf16.msra.mxu0 0
    %299 = vmatprep.subr.bf16.mxu0 0
    %300 = vmatpush1.bf16.msra.mxu0 0
    %301 = vmatprep.subr.bf16.mxu0 0
    %302 = vmatpush1.bf16.msra.mxu0 0
    %303 = vmatprep.subr.bf16.mxu0 0
    %304 = vmatpush1.bf16.msra.mxu0 0
    %305 = vmatprep.subr.bf16.mxu0 0
    %306 = vmatpush1.bf16.msra.mxu0 0
    %307 = vmatprep.subr.bf16.mxu0 0
    %308 = vmatpush1.bf16.msra.mxu0 0
    %309 = vmatprep.subr.bf16.mxu0 0
    %310 = vmatpush1.bf16.msra.mxu0 0
    %311 = vmatprep.subr.bf16.mxu0 0
    %312 = vmatpush1.bf16.msra.mxu0 0
    %313 = vmatprep.subr.bf16.mxu0 0
    %314 = vmatpush1.bf16.msra.mxu0 0
    %315 = vmatprep.subr.bf16.mxu0 0
    %316 = vmatpush1.bf16.msra.mxu0 0
    %317 = vmatprep.subr.bf16.mxu0 0
    %318 = vmatpush1.bf16.msra.mxu0 0
    %319 = vmatprep.subr.bf16.mxu0 0
    %320 = vmatpush1.bf16.msra.mxu0 0
    %321 = vmatprep.subr.bf16.mxu0 0
    %322 = vmatpush1.bf16.msra.mxu0 0
    %323 = vmatprep.mubr.bf16.mxu0 0
    %324 = vmatmul.mubr.bf16.gmra.mrb[0].mxu0 %v286
    %v325 = vpop.f32.mrb[0].mxu0
    %v326 = vadd.f32 %v265, %v325
    %v327 = vpop.f32.mrb[0].mxu0
    %v328 = vpop.f32.mrb[0].mxu0
    %v329 = vadd.f32 %v268, %v328
    %v330 = vpop.f32.mrb[0].mxu0
    %331 = vmatprep.mubr.bf16.mxu0 0
    %332 = vmatmul.mubr.bf16.gmra.mrb[0].mxu0 %v289
    %v333 = vpop.f32.mrb[0].mxu0
    %v334 = vadd.f32 %v273, %v333
    %v335 = vpop.f32.mrb[0].mxu0
    %v336 = vpop.f32.mrb[0].mxu0
    %v337 = vadd.f32 %v276, %v336
    %v338 = vpop.f32.mrb[0].mxu0
    %339 = vdwg.mxu0
    %340 = vmatprep.subr.bf16.mxu0 0
    %341 = vmatpush1.bf16.msra.mxu0 %v213
    %342 = vmatprep.subr.bf16.mxu0 0
    %343 = vmatpush1.bf16.msra.mxu0 0
    %344 = vmatprep.subr.bf16.mxu0 0
    %345 = vmatpush1.bf16.msra.mxu0 0
    %346 = vmatprep.subr.bf16.mxu0 0
    %347 = vmatpush1.bf16.msra.mxu0 0
    %348 = vmatprep.subr.bf16.mxu0 0
    %349 = vmatpush1.bf16.msra.mxu0 0
    %350 = vmatprep.subr.bf16.mxu0 0
    %351 = vmatpush1.bf16.msra.mxu0 0
    %352 = vmatprep.subr.bf16.mxu0 0
    %353 = vmatpush1.bf16.msra.mxu0 0
    %354 = vmatprep.subr.bf16.mxu0 0
    %355 = vmatpush1.bf16.msra.mxu0 0
    %356 = vmatprep.subr.bf16.mxu0 0
    %357 = vmatpush1.bf16.msra.mxu0 0
    %358 = vmatprep.subr.bf16.mxu0 0
    %359 = vmatpush1.bf16.msra.mxu0 0
    %360 = vmatprep.subr.bf16.mxu0 0
    %361 = vmatpush1.bf16.msra.mxu0 0
    %362 = vmatprep.subr.bf16.mxu0 0
    %363 = vmatpush1.bf16.msra.mxu0 0
    %364 = vmatprep.subr.bf16.mxu0 0
    %365 = vmatpush1.bf16.msra.mxu0 0
    %366 = vmatprep.subr.bf16.mxu0 0
    %367 = vmatpush1.bf16.msra.mxu0 0
    %368 = vmatprep.subr.bf16.mxu0 0
    %369 = vmatpush1.bf16.msra.mxu0 0
    %370 = vmatprep.subr.bf16.mxu0 0
    %371 = vmatpush1.bf16.msra.mxu0 0
    %372 = vmatprep.mubr.bf16.mxu0 0
    %373 = vmatmul.mubr.bf16.gmra.mrb[0].mxu0 %v115
    %v374 = vpop.f32.mrb[0].mxu0
    %v375 = vadd.f32 0.0, %v374
    %v376 = vpop.f32.mrb[0].mxu0
    %v377 = vpop.f32.mrb[0].mxu0
    %v378 = vadd.f32 0.0, %v377
    %v379 = vpop.f32.mrb[0].mxu0
    %380 = vdwg.mxu0
    %381 = vmatprep.subr.bf16.mxu0 0
    %382 = vmatpush1.bf16.msra.mxu0 %v214
    %383 = vmatprep.subr.bf16.mxu0 0
    %384 = vmatpush1.bf16.msra.mxu0 0
    %385 = vmatprep.subr.bf16.mxu0 0
    %386 = vmatpush1.bf16.msra.mxu0 0
    %387 = vmatprep.subr.bf16.mxu0 0
    %388 = vmatpush1.bf16.msra.mxu0 0
    %389 = vmatprep.subr.bf16.mxu0 0
    %390 = vmatpush1.bf16.msra.mxu0 0
    %391 = vmatprep.subr.bf16.mxu0 0
    %392 = vmatpush1.bf16.msra.mxu0 0
    %393 = vmatprep.subr.bf16.mxu0 0
    %394 = vmatpush1.bf16.msra.mxu0 0
    %395 = vmatprep.subr.bf16.mxu0 0
    %396 = vmatpush1.bf16.msra.mxu0 0
    %397 = vmatprep.subr.bf16.mxu0 0
    %398 = vmatpush1.bf16.msra.mxu0 0
    %399 = vmatprep.subr.bf16.mxu0 0
    %400 = vmatpush1.bf16.msra.mxu0 0
    %401 = vmatprep.subr.bf16.mxu0 0
    %402 = vmatpush1.bf16.msra.mxu0 0
    %403 = vmatprep.subr.bf16.mxu0 0
    %404 = vmatpush1.bf16.msra.mxu0 0
    %405 = vmatprep.subr.bf16.mxu0 0
    %406 = vmatpush1.bf16.msra.mxu0 0
    %407 = vmatprep.subr.bf16.mxu0 0
    %408 = vmatpush1.bf16.msra.mxu0 0
    %409 = vmatprep.subr.bf16.mxu0 0
    %410 = vmatpush1.bf16.msra.mxu0 0
    %411 = vmatprep.subr.bf16.mxu0 0
    %412 = vmatpush1.bf16.msra.mxu0 0
    %413 = vmatprep.mubr.bf16.mxu0 0
    %414 = vmatmul.mubr.bf16.gmra.mrb[0].mxu0 %v115
    %v415 = vpop.f32.mrb[0].mxu0
    %v416 = vadd.f32 0.0, %v415
    %v417 = vpop.f32.mrb[0].mxu0
    %v418 = vpop.f32.mrb[0].mxu0
    %v419 = vadd.f32 0.0, %v418
    %v420 = vpop.f32.mrb[0].mxu0
    %421 = vdwg.mxu0
    %v422 = vmul.f32 %v375, 0.7
    %v423 = vmul.f32 %v378, 0.7
    %v424 = vmul.f32 %v416, 0.7
    %v425 = vmul.f32 %v419, 0.7
    %v426 = vadd.f32 %v98, %v422
    %v427 = vadd.f32 %v99, %v423
    %v428 = vadd.f32 %v100, %v424
    %v429 = vadd.f32 %v101, %v425
    %v430 = vpack.c.bf16 %v427, %v426
    %v431 = vpack.c.bf16 %v429, %v428
    %s432 = scalar_lea.vmem %s3, 16
    %v433 = vld [vmem:[%s432] sm:$0xf]
    %v434 = vld [vmem:[%s432 + $0x4] sm:$0xf]
    %v437 = vunpack.c.l.b16 %v433
    %v438 = vunpack.c.l.b16 %v434
    %v439 = vpack.c.b16 %v438, %v437
    %v442 = vsel %vm113, %v430, 0
    %v445 = vsel %vm113, %v431, 0
    %447 = vmatprep.subr.bf16.mxu0 0
    %448 = vmatpush1.bf16.msra.mxu0 %v439
    %449 = vmatprep.subr.bf16.mxu0 0
    %450 = vmatpush1.bf16.msra.mxu0 0
    %451 = vmatprep.subr.bf16.mxu0 0
    %452 = vmatpush1.bf16.msra.mxu0 0
    %453 = vmatprep.subr.bf16.mxu0 0
    %454 = vmatpush1.bf16.msra.mxu0 0
    %455 = vmatprep.subr.bf16.mxu0 0
    %456 = vmatpush1.bf16.msra.mxu0 0
    %457 = vmatprep.subr.bf16.mxu0 0
    %458 = vmatpush1.bf16.msra.mxu0 0
    %459 = vmatprep.subr.bf16.mxu0 0
    %460 = vmatpush1.bf16.msra.mxu0 0
    %461 = vmatprep.subr.bf16.mxu0 0
    %462 = vmatpush1.bf16.msra.mxu0 0
    %463 = vmatprep.subr.bf16.mxu0 0
    %464 = vmatpush1.bf16.msra.mxu0 0
    %465 = vmatprep.subr.bf16.mxu0 0
    %466 = vmatpush1.bf16.msra.mxu0 0
    %467 = vmatprep.subr.bf16.mxu0 0
    %468 = vmatpush1.bf16.msra.mxu0 0
    %469 = vmatprep.subr.bf16.mxu0 0
    %470 = vmatpush1.bf16.msra.mxu0 0
    %471 = vmatprep.subr.bf16.mxu0 0
    %472 = vmatpush1.bf16.msra.mxu0 0
    %473 = vmatprep.subr.bf16.mxu0 0
    %474 = vmatpush1.bf16.msra.mxu0 0
    %475 = vmatprep.subr.bf16.mxu0 0
    %476 = vmatpush1.bf16.msra.mxu0 0
    %477 = vmatprep.subr.bf16.mxu0 0
    %478 = vmatpush1.bf16.msra.mxu0 0
    %479 = vmatprep.mubr.bf16.mxu0 0
    %480 = vmatmul.mubr.bf16.gmra.mrb[0].mxu0 %v442
    %v481 = vpop.f32.mrb[0].mxu0
    %v482 = vadd.f32 0.0, %v481
    %v483 = vpop.f32.mrb[0].mxu0
    %v484 = vpop.f32.mrb[0].mxu0
    %v485 = vadd.f32 0.0, %v484
    %v486 = vpop.f32.mrb[0].mxu0
    %487 = vmatprep.mubr.bf16.mxu0 0
    %488 = vmatmul.mubr.bf16.gmra.mrb[0].mxu0 %v445
    %v489 = vpop.f32.mrb[0].mxu0
    %v490 = vadd.f32 0.0, %v489
    %v491 = vpop.f32.mrb[0].mxu0
    %v492 = vpop.f32.mrb[0].mxu0
    %v493 = vadd.f32 0.0, %v492
    %v494 = vpop.f32.mrb[0].mxu0
    %495 = vdwg.mxu0
    %v496 = vadd.f32 %v326, %v482
    %v497 = vadd.f32 %v329, %v485
    %v498 = vadd.f32 %v334, %v490
    %v499 = vadd.f32 %v337, %v493
    %v500 = vld [vmem:[%s6] sm:$0x1]
    %v502 = vlaneseq
    %v503 = vshrl.u32 %v502, 7
    %v504 = vsub.s32 0, %v503
    %v505 = vrot.slane %v500, %v504
    %v507 = vadd.f32 %v496, %v505
    %v508 = vadd.f32 %v497, %v505
    %v509 = vadd.f32 %v498, %v505
    %v510 = vadd.f32 %v499, %v505
    %v511 = vld [vmem:[#allocation5] sm:$0xf]
    %v512 = vld [vmem:[#allocation5 + $0x4] sm:$0xf]
    %v513 = vld [vmem:[#allocation5 + $0x8] sm:$0xf]
    %v514 = vld [vmem:[#allocation5 + $0xc] sm:$0xf]
    %v515 = vmul.f32 %v88, 0.3
    %v516 = vmul.f32 %v89, 0.3
    %v517 = vmul.f32 %v90, 0.3
    %v518 = vmul.f32 %v91, 0.3
    %v521 = vunpack.c.l.b16 %v82
    %v522 = vunpack.c.l.b16 %v83
    %v523 = vpack.c.b16 %v522, %v521
    %525 = vmatprep.subr.bf16.mxu0 0
    %526 = vmatpush1.bf16.msra.mxu0 %v523
    %527 = vmatprep.subr.bf16.mxu0 0
    %528 = vmatpush1.bf16.msra.mxu0 0
    %529 = vmatprep.subr.bf16.mxu0 0
    %530 = vmatpush1.bf16.msra.mxu0 0
    %531 = vmatprep.subr.bf16.mxu0 0
    %532 = vmatpush1.bf16.msra.mxu0 0
    %533 = vmatprep.subr.bf16.mxu0 0
    %534 = vmatpush1.bf16.msra.mxu0 0
    %535 = vmatprep.subr.bf16.mxu0 0
    %536 = vmatpush1.bf16.msra.mxu0 0
    %537 = vmatprep.subr.bf16.mxu0 0
    %538 = vmatpush1.bf16.msra.mxu0 0
    %539 = vmatprep.subr.bf16.mxu0 0
    %540 = vmatpush1.bf16.msra.mxu0 0
    %541 = vmatprep.subr.bf16.mxu0 0
    %542 = vmatpush1.bf16.msra.mxu0 0
    %543 = vmatprep.subr.bf16.mxu0 0
    %544 = vmatpush1.bf16.msra.mxu0 0
    %545 = vmatprep.subr.bf16.mxu0 0
    %546 = vmatpush1.bf16.msra.mxu0 0
    %547 = vmatprep.subr.bf16.mxu0 0
    %548 = vmatpush1.bf16.msra.mxu0 0
    %549 = vmatprep.subr.bf16.mxu0 0
    %550 = vmatpush1.bf16.msra.mxu0 0
    %551 = vmatprep.subr.bf16.mxu0 0
    %552 = vmatpush1.bf16.msra.mxu0 0
    %553 = vmatprep.subr.bf16.mxu0 0
    %554 = vmatpush1.bf16.msra.mxu0 0
    %555 = vmatprep.subr.bf16.mxu0 0
    %556 = vmatpush1.bf16.msra.mxu0 0
    %557 = vmatprep.mubr.bf16.mxu0 0
    %558 = vmatmul.mubr.bf16.gmra.mrb[0].mxu0 %v115
    %v559 = vpop.f32.mrb[0].mxu0
    %v560 = vadd.f32 0.0, %v559
    %v561 = vpop.f32.mrb[0].mxu0
    %v562 = vpop.f32.mrb[0].mxu0
    %v563 = vadd.f32 0.0, %v562
    %v564 = vpop.f32.mrb[0].mxu0
    %565 = vdwg.mxu0
    %v568 = vunpack.c.l.b16 %v84
    %v569 = vunpack.c.l.b16 %v85
    %v570 = vpack.c.b16 %v569, %v568
    %572 = vmatprep.subr.bf16.mxu0 0
    %573 = vmatpush1.bf16.msra.mxu0 %v570
    %574 = vmatprep.subr.bf16.mxu0 0
    %575 = vmatpush1.bf16.msra.mxu0 0
    %576 = vmatprep.subr.bf16.mxu0 0
    %577 = vmatpush1.bf16.msra.mxu0 0
    %578 = vmatprep.subr.bf16.mxu0 0
    %579 = vmatpush1.bf16.msra.mxu0 0
    %580 = vmatprep.subr.bf16.mxu0 0
    %581 = vmatpush1.bf16.msra.mxu0 0
    %582 = vmatprep.subr.bf16.mxu0 0
    %583 = vmatpush1.bf16.msra.mxu0 0
    %584 = vmatprep.subr.bf16.mxu0 0
    %585 = vmatpush1.bf16.msra.mxu0 0
    %586 = vmatprep.subr.bf16.mxu0 0
    %587 = vmatpush1.bf16.msra.mxu0 0
    %588 = vmatprep.subr.bf16.mxu0 0
    %589 = vmatpush1.bf16.msra.mxu0 0
    %590 = vmatprep.subr.bf16.mxu0 0
    %591 = vmatpush1.bf16.msra.mxu0 0
    %592 = vmatprep.subr.bf16.mxu0 0
    %593 = vmatpush1.bf16.msra.mxu0 0
    %594 = vmatprep.subr.bf16.mxu0 0
    %595 = vmatpush1.bf16.msra.mxu0 0
    %596 = vmatprep.subr.bf16.mxu0 0
    %597 = vmatpush1.bf16.msra.mxu0 0
    %598 = vmatprep.subr.bf16.mxu0 0
    %599 = vmatpush1.bf16.msra.mxu0 0
    %600 = vmatprep.subr.bf16.mxu0 0
    %601 = vmatpush1.bf16.msra.mxu0 0
    %602 = vmatprep.subr.bf16.mxu0 0
    %603 = vmatpush1.bf16.msra.mxu0 0
    %604 = vmatprep.mubr.bf16.mxu0 0
    %605 = vmatmul.mubr.bf16.gmra.mrb[0].mxu0 %v115
    %v606 = vpop.f32.mrb[0].mxu0
    %v607 = vadd.f32 0.0, %v606
    %v608 = vpop.f32.mrb[0].mxu0
    %v609 = vpop.f32.mrb[0].mxu0
    %v610 = vadd.f32 0.0, %v609
    %v611 = vpop.f32.mrb[0].mxu0
    %612 = vdwg.mxu0
    %v613 = vmul.f32 %v560, 0.7
    %v614 = vmul.f32 %v563, 0.7
    %v615 = vmul.f32 %v607, 0.7
    %v616 = vmul.f32 %v610, 0.7
    %v617 = vadd.f32 %v515, %v613
    %v618 = vadd.f32 %v516, %v614
    %v619 = vadd.f32 %v517, %v615
    %v620 = vadd.f32 %v518, %v616
    %v621 = vpack.c.bf16 %v618, %v617
    %v622 = vpack.c.bf16 %v620, %v619
    %s623 = scalar_lea.vmem [#allocation5], 16
    %v624 = vld [vmem:[%s623] sm:$0xf]
    %v625 = vld [vmem:[%s623 + $0x4] sm:$0xf]
    %v626 = vld [vmem:[%s623 + $0x8] sm:$0xf]
    %v627 = vld [vmem:[%s623 + $0xc] sm:$0xf]
    %v632 = vunpack.c.l.b16 %v624
    %v633 = vunpack.c.l.b16 %v625
    %v634 = vunpack.c.l.b16 %v626
    %v635 = vunpack.c.l.b16 %v627
    %v636 = vpack.c.b16 %v633, %v632
    %v637 = vpack.c.b16 %v635, %v634
    %vm640 = vcmask 261120
    %v642 = vsel %vm640, %v621, 0
    %v645 = vsel %vm640, %v622, 0
    %647 = vmatprep.subr.bf16.mxu0 0
    %648 = vmatpush1.bf16.msra.mxu0 %v636
    %649 = vmatprep.subr.bf16.mxu0 0
    %650 = vmatpush1.bf16.msra.mxu0 %v637
    %651 = vmatprep.subr.bf16.mxu0 0
    %652 = vmatpush1.bf16.msra.mxu0 0
    %653 = vmatprep.subr.bf16.mxu0 0
    %654 = vmatpush1.bf16.msra.mxu0 0
    %655 = vmatprep.subr.bf16.mxu0 0
    %656 = vmatpush1.bf16.msra.mxu0 0
    %657 = vmatprep.subr.bf16.mxu0 0
    %658 = vmatpush1.bf16.msra.mxu0 0
    %659 = vmatprep.subr.bf16.mxu0 0
    %660 = vmatpush1.bf16.msra.mxu0 0
    %661 = vmatprep.subr.bf16.mxu0 0
    %662 = vmatpush1.bf16.msra.mxu0 0
    %663 = vmatprep.subr.bf16.mxu0 0
    %664 = vmatpush1.bf16.msra.mxu0 0
    %665 = vmatprep.subr.bf16.mxu0 0
    %666 = vmatpush1.bf16.msra.mxu0 0
    %667 = vmatprep.subr.bf16.mxu0 0
    %668 = vmatpush1.bf16.msra.mxu0 0
    %669 = vmatprep.subr.bf16.mxu0 0
    %670 = vmatpush1.bf16.msra.mxu0 0
    %671 = vmatprep.subr.bf16.mxu0 0
    %672 = vmatpush1.bf16.msra.mxu0 0
    %673 = vmatprep.subr.bf16.mxu0 0
    %674 = vmatpush1.bf16.msra.mxu0 0
    %675 = vmatprep.subr.bf16.mxu0 0
    %676 = vmatpush1.bf16.msra.mxu0 0
    %677 = vmatprep.subr.bf16.mxu0 0
    %678 = vmatpush1.bf16.msra.mxu0 0
    %679 = vmatprep.mubr.bf16.mxu0 0
    %680 = vmatmul.mubr.bf16.gmra.mrb[0].mxu0 %v642
    %v681 = vpop.f32.mrb[0].mxu0
    %v682 = vadd.f32 0.0, %v681
    %v683 = vpop.f32.mrb[0].mxu0
    %v684 = vpop.f32.mrb[0].mxu0
    %v685 = vadd.f32 0.0, %v684
    %v686 = vpop.f32.mrb[0].mxu0
    %687 = vmatprep.mubr.bf16.mxu0 0
    %688 = vmatmul.mubr.bf16.gmra.mrb[0].mxu0 %v645
    %v689 = vpop.f32.mrb[0].mxu0
    %v690 = vadd.f32 0.0, %v689
    %v691 = vpop.f32.mrb[0].mxu0
    %v692 = vpop.f32.mrb[0].mxu0
    %v693 = vadd.f32 0.0, %v692
    %v694 = vpop.f32.mrb[0].mxu0
    %695 = vdwg.mxu0
    %v700 = vunpack.c.l.b16 %v511
    %v701 = vunpack.c.l.b16 %v512
    %v702 = vunpack.c.l.b16 %v513
    %v703 = vunpack.c.l.b16 %v514
    %v704 = vpack.c.b16 %v701, %v700
    %v705 = vpack.c.b16 %v703, %v702
    %v709 = vsel %vm640, %v523, 0
    %v712 = vsel %vm640, %v570, 0
    %714 = vmatprep.subr.bf16.mxu0 0
    %715 = vmatpush1.bf16.msra.mxu0 %v704
    %716 = vmatprep.subr.bf16.mxu0 0
    %717 = vmatpush1.bf16.msra.mxu0 %v705
    %718 = vmatprep.subr.bf16.mxu0 0
    %719 = vmatpush1.bf16.msra.mxu0 0
    %720 = vmatprep.subr.bf16.mxu0 0
    %721 = vmatpush1.bf16.msra.mxu0 0
    %722 = vmatprep.subr.bf16.mxu0 0
    %723 = vmatpush1.bf16.msra.mxu0 0
    %724 = vmatprep.subr.bf16.mxu0 0
    %725 = vmatpush1.bf16.msra.mxu0 0
    %726 = vmatprep.subr.bf16.mxu0 0
    %727 = vmatpush1.bf16.msra.mxu0 0
    %728 = vmatprep.subr.bf16.mxu0 0
    %729 = vmatpush1.bf16.msra.mxu0 0
    %730 = vmatprep.subr.bf16.mxu0 0
    %731 = vmatpush1.bf16.msra.mxu0 0
    %732 = vmatprep.subr.bf16.mxu0 0
    %733 = vmatpush1.bf16.msra.mxu0 0
    %734 = vmatprep.subr.bf16.mxu0 0
    %735 = vmatpush1.bf16.msra.mxu0 0
    %736 = vmatprep.subr.bf16.mxu0 0
    %737 = vmatpush1.bf16.msra.mxu0 0
    %738 = vmatprep.subr.bf16.mxu0 0
    %739 = vmatpush1.bf16.msra.mxu0 0
    %740 = vmatprep.subr.bf16.mxu0 0
    %741 = vmatpush1.bf16.msra.mxu0 0
    %742 = vmatprep.subr.bf16.mxu0 0
    %743 = vmatpush1.bf16.msra.mxu0 0
    %744 = vmatprep.subr.bf16.mxu0 0
    %745 = vmatpush1.bf16.msra.mxu0 0
    %746 = vmatprep.mubr.bf16.mxu0 0
    %747 = vmatmul.mubr.bf16.gmra.mrb[0].mxu0 %v709
    %v748 = vpop.f32.mrb[0].mxu0
    %v749 = vadd.f32 %v682, %v748
    %v750 = vpop.f32.mrb[0].mxu0
    %v751 = vpop.f32.mrb[0].mxu0
    %v752 = vadd.f32 %v685, %v751
    %v753 = vpop.f32.mrb[0].mxu0
    %754 = vmatprep.mubr.bf16.mxu0 0
    %755 = vmatmul.mubr.bf16.gmra.mrb[0].mxu0 %v712
    %v756 = vpop.f32.mrb[0].mxu0
    %v757 = vadd.f32 %v690, %v756
    %v758 = vpop.f32.mrb[0].mxu0
    %v759 = vpop.f32.mrb[0].mxu0
    %v760 = vadd.f32 %v693, %v759
    %v761 = vpop.f32.mrb[0].mxu0
    %762 = vdwg.mxu0
    %763 = vmatprep.subr.bf16.mxu0 0
    %764 = vmatpush1.bf16.msra.mxu0 %v621
    %765 = vmatprep.subr.bf16.mxu0 0
    %766 = vmatpush1.bf16.msra.mxu0 0
    %767 = vmatprep.subr.bf16.mxu0 0
    %768 = vmatpush1.bf16.msra.mxu0 0
    %769 = vmatprep.subr.bf16.mxu0 0
    %770 = vmatpush1.bf16.msra.mxu0 0
    %771 = vmatprep.subr.bf16.mxu0 0
    %772 = vmatpush1.bf16.msra.mxu0 0
    %773 = vmatprep.subr.bf16.mxu0 0
    %774 = vmatpush1.bf16.msra.mxu0 0
    %775 = vmatprep.subr.bf16.mxu0 0
    %776 = vmatpush1.bf16.msra.mxu0 0
    %777 = vmatprep.subr.bf16.mxu0 0
    %778 = vmatpush1.bf16.msra.mxu0 0
    %779 = vmatprep.subr.bf16.mxu0 0
    %780 = vmatpush1.bf16.msra.mxu0 0
    %781 = vmatprep.subr.bf16.mxu0 0
    %782 = vmatpush1.bf16.msra.mxu0 0
    %783 = vmatprep.subr.bf16.mxu0 0
    %784 = vmatpush1.bf16.msra.mxu0 0
    %785 = vmatprep.subr.bf16.mxu0 0
    %786 = vmatpush1.bf16.msra.mxu0 0
    %787 = vmatprep.subr.bf16.mxu0 0
    %788 = vmatpush1.bf16.msra.mxu0 0
    %789 = vmatprep.subr.bf16.mxu0 0
    %790 = vmatpush1.bf16.msra.mxu0 0
    %791 = vmatprep.subr.bf16.mxu0 0
    %792 = vmatpush1.bf16.msra.mxu0 0
    %793 = vmatprep.subr.bf16.mxu0 0
    %794 = vmatpush1.bf16.msra.mxu0 0
    %795 = vmatprep.mubr.bf16.mxu0 0
    %796 = vmatmul.mubr.bf16.gmra.mrb[0].mxu0 %v115
    %v797 = vpop.f32.mrb[0].mxu0
    %v798 = vadd.f32 0.0, %v797
    %v799 = vpop.f32.mrb[0].mxu0
    %v800 = vpop.f32.mrb[0].mxu0
    %v801 = vadd.f32 0.0, %v800
    %v802 = vpop.f32.mrb[0].mxu0
    %803 = vdwg.mxu0
    %804 = vmatprep.subr.bf16.mxu0 0
    %805 = vmatpush1.bf16.msra.mxu0 %v622
    %806 = vmatprep.subr.bf16.mxu0 0
    %807 = vmatpush1.bf16.msra.mxu0 0
    %808 = vmatprep.subr.bf16.mxu0 0
    %809 = vmatpush1.bf16.msra.mxu0 0
    %810 = vmatprep.subr.bf16.mxu0 0
    %811 = vmatpush1.bf16.msra.mxu0 0
    %812 = vmatprep.subr.bf16.mxu0 0
    %813 = vmatpush1.bf16.msra.mxu0 0
    %814 = vmatprep.subr.bf16.mxu0 0
    %815 = vmatpush1.bf16.msra.mxu0 0
    %816 = vmatprep.subr.bf16.mxu0 0
    %817 = vmatpush1.bf16.msra.mxu0 0
    %818 = vmatprep.subr.bf16.mxu0 0
    %819 = vmatpush1.bf16.msra.mxu0 0
    %820 = vmatprep.subr.bf16.mxu0 0
    %821 = vmatpush1.bf16.msra.mxu0 0
    %822 = vmatprep.subr.bf16.mxu0 0
    %823 = vmatpush1.bf16.msra.mxu0 0
    %824 = vmatprep.subr.bf16.mxu0 0
    %825 = vmatpush1.bf16.msra.mxu0 0
    %826 = vmatprep.subr.bf16.mxu0 0
    %827 = vmatpush1.bf16.msra.mxu0 0
    %828 = vmatprep.subr.bf16.mxu0 0
    %829 = vmatpush1.bf16.msra.mxu0 0
    %830 = vmatprep.subr.bf16.mxu0 0
    %831 = vmatpush1.bf16.msra.mxu0 0
    %832 = vmatprep.subr.bf16.mxu0 0
    %833 = vmatpush1.bf16.msra.mxu0 0
    %834 = vmatprep.subr.bf16.mxu0 0
    %835 = vmatpush1.bf16.msra.mxu0 0
    %836 = vmatprep.mubr.bf16.mxu0 0
    %837 = vmatmul.mubr.bf16.gmra.mrb[0].mxu0 %v115
    %v838 = vpop.f32.mrb[0].mxu0
    %v839 = vadd.f32 0.0, %v838
    %v840 = vpop.f32.mrb[0].mxu0
    %v841 = vpop.f32.mrb[0].mxu0
    %v842 = vadd.f32 0.0, %v841
    %v843 = vpop.f32.mrb[0].mxu0
    %844 = vdwg.mxu0
    %v845 = vmul.f32 %v798, 0.7
    %v846 = vmul.f32 %v801, 0.7
    %v847 = vmul.f32 %v839, 0.7
    %v848 = vmul.f32 %v842, 0.7
    %v849 = vadd.f32 %v515, %v845
    %v850 = vadd.f32 %v516, %v846
    %v851 = vadd.f32 %v517, %v847
    %v852 = vadd.f32 %v518, %v848
    %v853 = vpack.c.bf16 %v850, %v849
    %v854 = vpack.c.bf16 %v852, %v851
    %s855 = scalar_lea.vmem [#allocation5], 32
    %v856 = vld [vmem:[%s855] sm:$0xf]
    %v857 = vld [vmem:[%s855 + $0x4] sm:$0xf]
    %v858 = vld [vmem:[%s855 + $0x8] sm:$0xf]
    %v859 = vld [vmem:[%s855 + $0xc] sm:$0xf]
    %v864 = vunpack.c.l.b16 %v856
    %v865 = vunpack.c.l.b16 %v857
    %v866 = vunpack.c.l.b16 %v858
    %v867 = vunpack.c.l.b16 %v859
    %v868 = vpack.c.b16 %v865, %v864
    %v869 = vpack.c.b16 %v867, %v866
    %v873 = vsel %vm640, %v853, 0
    %v876 = vsel %vm640, %v854, 0
    %878 = vmatprep.subr.bf16.mxu0 0
    %879 = vmatpush1.bf16.msra.mxu0 %v868
    %880 = vmatprep.subr.bf16.mxu0 0
    %881 = vmatpush1.bf16.msra.mxu0 %v869
    %882 = vmatprep.subr.bf16.mxu0 0
    %883 = vmatpush1.bf16.msra.mxu0 0
    %884 = vmatprep.subr.bf16.mxu0 0
    %885 = vmatpush1.bf16.msra.mxu0 0
    %886 = vmatprep.subr.bf16.mxu0 0
    %887 = vmatpush1.bf16.msra.mxu0 0
    %888 = vmatprep.subr.bf16.mxu0 0
    %889 = vmatpush1.bf16.msra.mxu0 0
    %890 = vmatprep.subr.bf16.mxu0 0
    %891 = vmatpush1.bf16.msra.mxu0 0
    %892 = vmatprep.subr.bf16.mxu0 0
    %893 = vmatpush1.bf16.msra.mxu0 0
    %894 = vmatprep.subr.bf16.mxu0 0
    %895 = vmatpush1.bf16.msra.mxu0 0
    %896 = vmatprep.subr.bf16.mxu0 0
    %897 = vmatpush1.bf16.msra.mxu0 0
    %898 = vmatprep.subr.bf16.mxu0 0
    %899 = vmatpush1.bf16.msra.mxu0 0
    %900 = vmatprep.subr.bf16.mxu0 0
    %901 = vmatpush1.bf16.msra.mxu0 0
    %902 = vmatprep.subr.bf16.mxu0 0
    %903 = vmatpush1.bf16.msra.mxu0 0
    %904 = vmatprep.subr.bf16.mxu0 0
    %905 = vmatpush1.bf16.msra.mxu0 0
    %906 = vmatprep.subr.bf16.mxu0 0
    %907 = vmatpush1.bf16.msra.mxu0 0
    %908 = vmatprep.subr.bf16.mxu0 0
    %909 = vmatpush1.bf16.msra.mxu0 0
    %910 = vmatprep.mubr.bf16.mxu0 0
    %911 = vmatmul.mubr.bf16.gmra.mrb[0].mxu0 %v873
    %v912 = vpop.f32.mrb[0].mxu0
    %v913 = vadd.f32 0.0, %v912
    %v914 = vpop.f32.mrb[0].mxu0
    %v915 = vpop.f32.mrb[0].mxu0
    %v916 = vadd.f32 0.0, %v915
    %v917 = vpop.f32.mrb[0].mxu0
    %918 = vmatprep.mubr.bf16.mxu0 0
    %919 = vmatmul.mubr.bf16.gmra.mrb[0].mxu0 %v876
    %v920 = vpop.f32.mrb[0].mxu0
    %v921 = vadd.f32 0.0, %v920
    %v922 = vpop.f32.mrb[0].mxu0
    %v923 = vpop.f32.mrb[0].mxu0
    %v924 = vadd.f32 0.0, %v923
    %v925 = vpop.f32.mrb[0].mxu0
    %926 = vdwg.mxu0
    %v927 = vadd.f32 %v749, %v913
    %v928 = vadd.f32 %v752, %v916
    %v929 = vadd.f32 %v757, %v921
    %v930 = vadd.f32 %v760, %v924
    %v931 = vadd.f32 %v507, %v927
    %v932 = vadd.f32 %v508, %v928
    %v933 = vadd.f32 %v509, %v929
    %v934 = vadd.f32 %v510, %v930
    %v935 = vxor.u32 %v931, 2147483648
    %v936 = vxor.u32 %v932, 2147483648
    %v937 = vxor.u32 %v933, 2147483648
    %v938 = vxor.u32 %v934, 2147483648
    %v939 = vmul.f32 %v935, 1.442695
    %v940 = vpow.pop %v939
    %v941 = vmul.f32 %v936, 1.442695
    %v942 = vpow.pop %v941
    %v943 = vmul.f32 %v937, 1.442695
    %v944 = vpow.pop %v943
    %v945 = vmul.f32 %v938, 1.442695
    %v946 = vpow.pop %v945
    %v947 = vadd.f32 %v940, 1.0
    %v948 = vadd.f32 %v942, 1.0
    %v949 = vadd.f32 %v944, 1.0
    %v950 = vadd.f32 %v946, 1.0
    %v951 = vrcp.pop %v947
    %v952 = vmul.f32 1.0, %v951
    %v953 = vrcp.pop %v948
    %v954 = vmul.f32 1.0, %v953
    %v955 = vrcp.pop %v949
    %v956 = vmul.f32 1.0, %v955
    %v957 = vrcp.pop %v950
    %v958 = vmul.f32 1.0, %v957
    %963 = vrot.lane.b32.xlu0 %v88, 32
    %v964 = vpop.permute.xlu0 %963
    %965 = vrot.lane.b32.xlu0 %v89, 32
    %v966 = vpop.permute.xlu0 %965
    %967 = vrot.lane.b32.xlu0 %v90, 32
    %v968 = vpop.permute.xlu0 %967
    %969 = vrot.lane.b32.xlu0 %v91, 32
    %v970 = vpop.permute.xlu0 %969
    %v975 = vmul.f32 %v952, %v964
    %v976 = vmul.f32 %v954, %v966
    %v977 = vmul.f32 %v956, %v968
    %v978 = vmul.f32 %v958, %v970
    %v979 = vpack.c.bf16 %v976, %v975
    %v980 = vpack.c.bf16 %v978, %v977
    %v981 = vld [vmem:[#allocation7] sm:$0xf]
    %v982 = vld [vmem:[#allocation7 + $0x4] sm:$0xf]
    %v983 = vld [vmem:[#allocation7 + $0x8] sm:$0xf]
    %v984 = vld [vmem:[#allocation7 + $0xc] sm:$0xf]
    %v985 = vunpack.c.l.bf16 %v979
    %v986 = vunpack.c.h.bf16 %v979
    %v987 = vunpack.c.l.bf16 %v980
    %v988 = vunpack.c.h.bf16 %v980
    %v989 = vmul.f32 %v985, 0.3
    %v990 = vmul.f32 %v986, 0.3
    %v991 = vmul.f32 %v987, 0.3
    %v992 = vmul.f32 %v988, 0.3
    %994 = vrot.lane.b32.xlu0 %v979, 96
    %v995 = vpop.permute.xlu0 %994
    %997 = vmatprep.subr.bf16.mxu0 0
    %998 = vmatpush1.bf16.msra.mxu0 %v995
    %999 = vmatprep.subr.bf16.mxu0 0
    %1000 = vmatpush1.bf16.msra.mxu0 0
    %1001 = vmatprep.subr.bf16.mxu0 0
    %1002 = vmatpush1.bf16.msra.mxu0 0
    %1003 = vmatprep.subr.bf16.mxu0 0
    %1004 = vmatpush1.bf16.msra.mxu0 0
    %1005 = vmatprep.subr.bf16.mxu0 0
    %1006 = vmatpush1.bf16.msra.mxu0 0
    %1007 = vmatprep.subr.bf16.mxu0 0
    %1008 = vmatpush1.bf16.msra.mxu0 0
    %1009 = vmatprep.subr.bf16.mxu0 0
    %1010 = vmatpush1.bf16.msra.mxu0 0
    %1011 = vmatprep.subr.bf16.mxu0 0
    %1012 = vmatpush1.bf16.msra.mxu0 0
    %1013 = vmatprep.subr.bf16.mxu0 0
    %1014 = vmatpush1.bf16.msra.mxu0 0
    %1015 = vmatprep.subr.bf16.mxu0 0
    %1016 = vmatpush1.bf16.msra.mxu0 0
    %1017 = vmatprep.subr.bf16.mxu0 0
    %1018 = vmatpush1.bf16.msra.mxu0 0
    %1019 = vmatprep.subr.bf16.mxu0 0
    %1020 = vmatpush1.bf16.msra.mxu0 0
    %1021 = vmatprep.subr.bf16.mxu0 0
    %1022 = vmatpush1.bf16.msra.mxu0 0
    %1023 = vmatprep.subr.bf16.mxu0 0
    %1024 = vmatpush1.bf16.msra.mxu0 0
    %1025 = vmatprep.subr.bf16.mxu0 0
    %1026 = vmatpush1.bf16.msra.mxu0 0
    %1027 = vmatprep.subr.bf16.mxu0 0
    %1028 = vmatpush1.bf16.msra.mxu0 0
    %1029 = vmatprep.mubr.bf16.mxu0 0
    %1030 = vmatmul.mubr.bf16.gmra.mrb[0].mxu0 %v115
    %v1031 = vpop.f32.mrb[0].mxu0
    %v1032 = vadd.f32 0.0, %v1031
    %v1033 = vpop.f32.mrb[0].mxu0
    %v1034 = vpop.f32.mrb[0].mxu0
    %v1035 = vadd.f32 0.0, %v1034
    %v1036 = vpop.f32.mrb[0].mxu0
    %1037 = vdwg.mxu0
    %1039 = vrot.lane.b32.xlu0 %v980, 96
    %v1040 = vpop.permute.xlu0 %1039
    %1042 = vmatprep.subr.bf16.mxu0 0
    %1043 = vmatpush1.bf16.msra.mxu0 %v1040
    %1044 = vmatprep.subr.bf16.mxu0 0
    %1045 = vmatpush1.bf16.msra.mxu0 0
    %1046 = vmatprep.subr.bf16.mxu0 0
    %1047 = vmatpush1.bf16.msra.mxu0 0
    %1048 = vmatprep.subr.bf16.mxu0 0
    %1049 = vmatpush1.bf16.msra.mxu0 0
    %1050 = vmatprep.subr.bf16.mxu0 0
    %1051 = vmatpush1.bf16.msra.mxu0 0
    %1052 = vmatprep.subr.bf16.mxu0 0
    %1053 = vmatpush1.bf16.msra.mxu0 0
    %1054 = vmatprep.subr.bf16.mxu0 0
    %1055 = vmatpush1.bf16.msra.mxu0 0
    %1056 = vmatprep.subr.bf16.mxu0 0
    %1057 = vmatpush1.bf16.msra.mxu0 0
    %1058 = vmatprep.subr.bf16.mxu0 0
    %1059 = vmatpush1.bf16.msra.mxu0 0
    %1060 = vmatprep.subr.bf16.mxu0 0
    %1061 = vmatpush1.bf16.msra.mxu0 0
    %1062 = vmatprep.subr.bf16.mxu0 0
    %1063 = vmatpush1.bf16.msra.mxu0 0
    %1064 = vmatprep.subr.bf16.mxu0 0
    %1065 = vmatpush1.bf16.msra.mxu0 0
    %1066 = vmatprep.subr.bf16.mxu0 0
    %1067 = vmatpush1.bf16.msra.mxu0 0
    %1068 = vmatprep.subr.bf16.mxu0 0
    %1069 = vmatpush1.bf16.msra.mxu0 0
    %1070 = vmatprep.subr.bf16.mxu0 0
    %1071 = vmatpush1.bf16.msra.mxu0 0
    %1072 = vmatprep.subr.bf16.mxu0 0
    %1073 = vmatpush1.bf16.msra.mxu0 0
    %1074 = vmatprep.mubr.bf16.mxu0 0
    %1075 = vmatmul.mubr.bf16.gmra.mrb[0].mxu0 %v115
    %v1076 = vpop.f32.mrb[0].mxu0
    %v1077 = vadd.f32 0.0, %v1076
    %v1078 = vpop.f32.mrb[0].mxu0
    %v1079 = vpop.f32.mrb[0].mxu0
    %v1080 = vadd.f32 0.0, %v1079
    %v1081 = vpop.f32.mrb[0].mxu0
    %1082 = vdwg.mxu0
    %v1083 = vmul.f32 %v1032, 0.7
    %v1084 = vmul.f32 %v1035, 0.7
    %v1085 = vmul.f32 %v1077, 0.7
    %v1086 = vmul.f32 %v1080, 0.7
    %1091 = vrot.lane.b32.xlu0 %v1083, 32
    %v1092 = vpop.permute.xlu0 %1091
    %1093 = vrot.lane.b32.xlu0 %v1084, 32
    %v1094 = vpop.permute.xlu0 %1093
    %1095 = vrot.lane.b32.xlu0 %v1085, 32
    %v1096 = vpop.permute.xlu0 %1095
    %1097 = vrot.lane.b32.xlu0 %v1086, 32
    %v1098 = vpop.permute.xlu0 %1097
    %v1103 = vadd.f32 %v989, %v1092
    %v1104 = vadd.f32 %v990, %v1094
    %v1105 = vadd.f32 %v991, %v1096
    %v1106 = vadd.f32 %v992, %v1098
    %v1107 = vpack.c.bf16 %v1104, %v1103
    %v1108 = vpack.c.bf16 %v1106, %v1105
    %s1109 = scalar_lea.vmem [#allocation7], 16
    %v1110 = vld [vmem:[%s1109] sm:$0xf]
    %v1111 = vld [vmem:[%s1109 + $0x4] sm:$0xf]
    %v1112 = vld [vmem:[%s1109 + $0x8] sm:$0xf]
    %v1113 = vld [vmem:[%s1109 + $0xc] sm:$0xf]
    %1116 = vrot.lane.b32.xlu0 %v1107, 96
    %v1117 = vpop.permute.xlu0 %1116
    %1118 = vrot.lane.b32.xlu0 %v1108, 96
    %v1119 = vpop.permute.xlu0 %1118
    %v1124 = vunpack.c.l.b16 %v1110
    %v1125 = vunpack.c.l.b16 %v1111
    %v1126 = vunpack.c.l.b16 %v1112
    %v1127 = vunpack.c.l.b16 %v1113
    %v1128 = vpack.c.b16 %v1125, %v1124
    %v1129 = vpack.c.b16 %v1127, %v1126
    %v1133 = vsel %vm640, %v1117, 0
    %v1136 = vsel %vm640, %v1119, 0
    %1138 = vmatprep.subr.bf16.mxu0 0
    %1139 = vmatpush1.bf16.msra.mxu0 %v1128
    %1140 = vmatprep.subr.bf16.mxu0 0
    %1141 = vmatpush1.bf16.msra.mxu0 %v1129
    %1142 = vmatprep.subr.bf16.mxu0 0
    %1143 = vmatpush1.bf16.msra.mxu0 0
    %1144 = vmatprep.subr.bf16.mxu0 0
    %1145 = vmatpush1.bf16.msra.mxu0 0
    %1146 = vmatprep.subr.bf16.mxu0 0
    %1147 = vmatpush1.bf16.msra.mxu0 0
    %1148 = vmatprep.subr.bf16.mxu0 0
    %1149 = vmatpush1.bf16.msra.mxu0 0
    %1150 = vmatprep.subr.bf16.mxu0 0
    %1151 = vmatpush1.bf16.msra.mxu0 0
    %1152 = vmatprep.subr.bf16.mxu0 0
    %1153 = vmatpush1.bf16.msra.mxu0 0
    %1154 = vmatprep.subr.bf16.mxu0 0
    %1155 = vmatpush1.bf16.msra.mxu0 0
    %1156 = vmatprep.subr.bf16.mxu0 0
    %1157 = vmatpush1.bf16.msra.mxu0 0
    %1158 = vmatprep.subr.bf16.mxu0 0
    %1159 = vmatpush1.bf16.msra.mxu0 0
    %1160 = vmatprep.subr.bf16.mxu0 0
    %1161 = vmatpush1.bf16.msra.mxu0 0
    %1162 = vmatprep.subr.bf16.mxu0 0
    %1163 = vmatpush1.bf16.msra.mxu0 0
    %1164 = vmatprep.subr.bf16.mxu0 0
    %1165 = vmatpush1.bf16.msra.mxu0 0
    %1166 = vmatprep.subr.bf16.mxu0 0
    %1167 = vmatpush1.bf16.msra.mxu0 0
    %1168 = vmatprep.subr.bf16.mxu0 0
    %1169 = vmatpush1.bf16.msra.mxu0 0
    %1170 = vmatprep.mubr.bf16.mxu0 0
    %1171 = vmatmul.mubr.bf16.gmra.mrb[0].mxu0 %v1133
    %v1172 = vpop.f32.mrb[0].mxu0
    %v1173 = vadd.f32 0.0, %v1172
    %v1174 = vpop.f32.mrb[0].mxu0
    %v1175 = vpop.f32.mrb[0].mxu0
    %v1176 = vadd.f32 0.0, %v1175
    %v1177 = vpop.f32.mrb[0].mxu0
    %1178 = vmatprep.mubr.bf16.mxu0 0
    %1179 = vmatmul.mubr.bf16.gmra.mrb[0].mxu0 %v1136
    %v1180 = vpop.f32.mrb[0].mxu0
    %v1181 = vadd.f32 0.0, %v1180
    %v1182 = vpop.f32.mrb[0].mxu0
    %v1183 = vpop.f32.mrb[0].mxu0
    %v1184 = vadd.f32 0.0, %v1183
    %v1185 = vpop.f32.mrb[0].mxu0
    %1186 = vdwg.mxu0
    %v1191 = vunpack.c.l.b16 %v981
    %v1192 = vunpack.c.l.b16 %v982
    %v1193 = vunpack.c.l.b16 %v983
    %v1194 = vunpack.c.l.b16 %v984
    %v1195 = vpack.c.b16 %v1192, %v1191
    %v1196 = vpack.c.b16 %v1194, %v1193
    %v1200 = vsel %vm640, %v995, 0
    %v1203 = vsel %vm640, %v1040, 0
    %1205 = vmatprep.subr.bf16.mxu0 0
    %1206 = vmatpush1.bf16.msra.mxu0 %v1195
    %1207 = vmatprep.subr.bf16.mxu0 0
    %1208 = vmatpush1.bf16.msra.mxu0 %v1196
    %1209 = vmatprep.subr.bf16.mxu0 0
    %1210 = vmatpush1.bf16.msra.mxu0 0
    %1211 = vmatprep.subr.bf16.mxu0 0
    %1212 = vmatpush1.bf16.msra.mxu0 0
    %1213 = vmatprep.subr.bf16.mxu0 0
    %1214 = vmatpush1.bf16.msra.mxu0 0
    %1215 = vmatprep.subr.bf16.mxu0 0
    %1216 = vmatpush1.bf16.msra.mxu0 0
    %1217 = vmatprep.subr.bf16.mxu0 0
    %1218 = vmatpush1.bf16.msra.mxu0 0
    %1219 = vmatprep.subr.bf16.mxu0 0
    %1220 = vmatpush1.bf16.msra.mxu0 0
    %1221 = vmatprep.subr.bf16.mxu0 0
    %1222 = vmatpush1.bf16.msra.mxu0 0
    %1223 = vmatprep.subr.bf16.mxu0 0
    %1224 = vmatpush1.bf16.msra.mxu0 0
    %1225 = vmatprep.subr.bf16.mxu0 0
    %1226 = vmatpush1.bf16.msra.mxu0 0
    %1227 = vmatprep.subr.bf16.mxu0 0
    %1228 = vmatpush1.bf16.msra.mxu0 0
    %1229 = vmatprep.subr.bf16.mxu0 0
    %1230 = vmatpush1.bf16.msra.mxu0 0
    %1231 = vmatprep.subr.bf16.mxu0 0
    %1232 = vmatpush1.bf16.msra.mxu0 0
    %1233 = vmatprep.subr.bf16.mxu0 0
    %1234 = vmatpush1.bf16.msra.mxu0 0
    %1235 = vmatprep.subr.bf16.mxu0 0
    %1236 = vmatpush1.bf16.msra.mxu0 0
    %1237 = vmatprep.mubr.bf16.mxu0 0
    %1238 = vmatmul.mubr.bf16.gmra.mrb[0].mxu0 %v1200
    %v1239 = vpop.f32.mrb[0].mxu0
    %v1240 = vadd.f32 %v1173, %v1239
    %v1241 = vpop.f32.mrb[0].mxu0
    %v1242 = vpop.f32.mrb[0].mxu0
    %v1243 = vadd.f32 %v1176, %v1242
    %v1244 = vpop.f32.mrb[0].mxu0
    %1245 = vmatprep.mubr.bf16.mxu0 0
    %1246 = vmatmul.mubr.bf16.gmra.mrb[0].mxu0 %v1203
    %v1247 = vpop.f32.mrb[0].mxu0
    %v1248 = vadd.f32 %v1181, %v1247
    %v1249 = vpop.f32.mrb[0].mxu0
    %v1250 = vpop.f32.mrb[0].mxu0
    %v1251 = vadd.f32 %v1184, %v1250
    %v1252 = vpop.f32.mrb[0].mxu0
    %1253 = vdwg.mxu0
    %1255 = vmatprep.subr.bf16.mxu0 0
    %1256 = vmatpush1.bf16.msra.mxu0 %v1117
    %1257 = vmatprep.subr.bf16.mxu0 0
    %1258 = vmatpush1.bf16.msra.mxu0 0
    %1259 = vmatprep.subr.bf16.mxu0 0
    %1260 = vmatpush1.bf16.msra.mxu0 0
    %1261 = vmatprep.subr.bf16.mxu0 0
    %1262 = vmatpush1.bf16.msra.mxu0 0
    %1263 = vmatprep.subr.bf16.mxu0 0
    %1264 = vmatpush1.bf16.msra.mxu0 0
    %1265 = vmatprep.subr.bf16.mxu0 0
    %1266 = vmatpush1.bf16.msra.mxu0 0
    %1267 = vmatprep.subr.bf16.mxu0 0
    %1268 = vmatpush1.bf16.msra.mxu0 0
    %1269 = vmatprep.subr.bf16.mxu0 0
    %1270 = vmatpush1.bf16.msra.mxu0 0
    %1271 = vmatprep.subr.bf16.mxu0 0
    %1272 = vmatpush1.bf16.msra.mxu0 0
    %1273 = vmatprep.subr.bf16.mxu0 0
    %1274 = vmatpush1.bf16.msra.mxu0 0
    %1275 = vmatprep.subr.bf16.mxu0 0
    %1276 = vmatpush1.bf16.msra.mxu0 0
    %1277 = vmatprep.subr.bf16.mxu0 0
    %1278 = vmatpush1.bf16.msra.mxu0 0
    %1279 = vmatprep.subr.bf16.mxu0 0
    %1280 = vmatpush1.bf16.msra.mxu0 0
    %1281 = vmatprep.subr.bf16.mxu0 0
    %1282 = vmatpush1.bf16.msra.mxu0 0
    %1283 = vmatprep.subr.bf16.mxu0 0
    %1284 = vmatpush1.bf16.msra.mxu0 0
    %1285 = vmatprep.subr.bf16.mxu0 0
    %1286 = vmatpush1.bf16.msra.mxu0 0
    %1287 = vmatprep.mubr.bf16.mxu0 0
    %1288 = vmatmul.mubr.bf16.gmra.mrb[0].mxu0 %v115
    %v1289 = vpop.f32.mrb[0].mxu0
    %v1290 = vadd.f32 0.0, %v1289
    %v1291 = vpop.f32.mrb[0].mxu0
    %v1292 = vpop.f32.mrb[0].mxu0
    %v1293 = vadd.f32 0.0, %v1292
    %v1294 = vpop.f32.mrb[0].mxu0
    %1295 = vdwg.mxu0
    %1297 = vmatprep.subr.bf16.mxu0 0
    %1298 = vmatpush1.bf16.msra.mxu0 %v1119
    %1299 = vmatprep.subr.bf16.mxu0 0
    %1300 = vmatpush1.bf16.msra.mxu0 0
    %1301 = vmatprep.subr.bf16.mxu0 0
    %1302 = vmatpush1.bf16.msra.mxu0 0
    %1303 = vmatprep.subr.bf16.mxu0 0
    %1304 = vmatpush1.bf16.msra.mxu0 0
    %1305 = vmatprep.subr.bf16.mxu0 0
    %1306 = vmatpush1.bf16.msra.mxu0 0
    %1307 = vmatprep.subr.bf16.mxu0 0
    %1308 = vmatpush1.bf16.msra.mxu0 0
    %1309 = vmatprep.subr.bf16.mxu0 0
    %1310 = vmatpush1.bf16.msra.mxu0 0
    %1311 = vmatprep.subr.bf16.mxu0 0
    %1312 = vmatpush1.bf16.msra.mxu0 0
    %1313 = vmatprep.subr.bf16.mxu0 0
    %1314 = vmatpush1.bf16.msra.mxu0 0
    %1315 = vmatprep.subr.bf16.mxu0 0
    %1316 = vmatpush1.bf16.msra.mxu0 0
    %1317 = vmatprep.subr.bf16.mxu0 0
    %1318 = vmatpush1.bf16.msra.mxu0 0
    %1319 = vmatprep.subr.bf16.mxu0 0
    %1320 = vmatpush1.bf16.msra.mxu0 0
    %1321 = vmatprep.subr.bf16.mxu0 0
    %1322 = vmatpush1.bf16.msra.mxu0 0
    %1323 = vmatprep.subr.bf16.mxu0 0
    %1324 = vmatpush1.bf16.msra.mxu0 0
    %1325 = vmatprep.subr.bf16.mxu0 0
    %1326 = vmatpush1.bf16.msra.mxu0 0
    %1327 = vmatprep.subr.bf16.mxu0 0
    %1328 = vmatpush1.bf16.msra.mxu0 0
    %1329 = vmatprep.mubr.bf16.mxu0 0
    %1330 = vmatmul.mubr.bf16.gmra.mrb[0].mxu0 %v115
    %v1331 = vpop.f32.mrb[0].mxu0
    %v1332 = vadd.f32 0.0, %v1331
    %v1333 = vpop.f32.mrb[0].mxu0
    %v1334 = vpop.f32.mrb[0].mxu0
    %v1335 = vadd.f32 0.0, %v1334
    %v1336 = vpop.f32.mrb[0].mxu0
    %1337 = vdwg.mxu0
    %v1338 = vmul.f32 %v1290, 0.7
    %v1339 = vmul.f32 %v1293, 0.7
    %v1340 = vmul.f32 %v1332, 0.7
    %v1341 = vmul.f32 %v1335, 0.7
    %1346 = vrot.lane.b32.xlu0 %v1338, 32
    %v1347 = vpop.permute.xlu0 %1346
    %1348 = vrot.lane.b32.xlu0 %v1339, 32
    %v1349 = vpop.permute.xlu0 %1348
    %1350 = vrot.lane.b32.xlu0 %v1340, 32
    %v1351 = vpop.permute.xlu0 %1350
    %1352 = vrot.lane.b32.xlu0 %v1341, 32
    %v1353 = vpop.permute.xlu0 %1352
    %v1358 = vadd.f32 %v989, %v1347
    %v1359 = vadd.f32 %v990, %v1349
    %v1360 = vadd.f32 %v991, %v1351
    %v1361 = vadd.f32 %v992, %v1353
    %v1362 = vpack.c.bf16 %v1359, %v1358
    %v1363 = vpack.c.bf16 %v1361, %v1360
    %s1364 = scalar_lea.vmem [#allocation7], 32
    %v1365 = vld [vmem:[%s1364] sm:$0xf]
    %v1366 = vld [vmem:[%s1364 + $0x4] sm:$0xf]
    %v1367 = vld [vmem:[%s1364 + $0x8] sm:$0xf]
    %v1368 = vld [vmem:[%s1364 + $0xc] sm:$0xf]
    %1371 = vrot.lane.b32.xlu0 %v1362, 96
    %v1372 = vpop.permute.xlu0 %1371
    %1373 = vrot.lane.b32.xlu0 %v1363, 96
    %v1374 = vpop.permute.xlu0 %1373
    %v1379 = vunpack.c.l.b16 %v1365
    %v1380 = vunpack.c.l.b16 %v1366
    %v1381 = vunpack.c.l.b16 %v1367
    %v1382 = vunpack.c.l.b16 %v1368
    %v1383 = vpack.c.b16 %v1380, %v1379
    %v1384 = vpack.c.b16 %v1382, %v1381
    %v1388 = vsel %vm640, %v1372, 0
    %v1391 = vsel %vm640, %v1374, 0
    %1393 = vmatprep.subr.bf16.mxu0 0
    %1394 = vmatpush1.bf16.msra.mxu0 %v1383
    %1395 = vmatprep.subr.bf16.mxu0 0
    %1396 = vmatpush1.bf16.msra.mxu0 %v1384
    %1397 = vmatprep.subr.bf16.mxu0 0
    %1398 = vmatpush1.bf16.msra.mxu0 0
    %1399 = vmatprep.subr.bf16.mxu0 0
    %1400 = vmatpush1.bf16.msra.mxu0 0
    %1401 = vmatprep.subr.bf16.mxu0 0
    %1402 = vmatpush1.bf16.msra.mxu0 0
    %1403 = vmatprep.subr.bf16.mxu0 0
    %1404 = vmatpush1.bf16.msra.mxu0 0
    %1405 = vmatprep.subr.bf16.mxu0 0
    %1406 = vmatpush1.bf16.msra.mxu0 0
    %1407 = vmatprep.subr.bf16.mxu0 0
    %1408 = vmatpush1.bf16.msra.mxu0 0
    %1409 = vmatprep.subr.bf16.mxu0 0
    %1410 = vmatpush1.bf16.msra.mxu0 0
    %1411 = vmatprep.subr.bf16.mxu0 0
    %1412 = vmatpush1.bf16.msra.mxu0 0
    %1413 = vmatprep.subr.bf16.mxu0 0
    %1414 = vmatpush1.bf16.msra.mxu0 0
    %1415 = vmatprep.subr.bf16.mxu0 0
    %1416 = vmatpush1.bf16.msra.mxu0 0
    %1417 = vmatprep.subr.bf16.mxu0 0
    %1418 = vmatpush1.bf16.msra.mxu0 0
    %1419 = vmatprep.subr.bf16.mxu0 0
    %1420 = vmatpush1.bf16.msra.mxu0 0
    %1421 = vmatprep.subr.bf16.mxu0 0
    %1422 = vmatpush1.bf16.msra.mxu0 0
    %1423 = vmatprep.subr.bf16.mxu0 0
    %1424 = vmatpush1.bf16.msra.mxu0 0
    %1425 = vmatprep.mubr.bf16.mxu0 0
    %1426 = vmatmul.mubr.bf16.gmra.mrb[0].mxu0 %v1388
    %v1427 = vpop.f32.mrb[0].mxu0
    %v1428 = vadd.f32 0.0, %v1427
    %v1429 = vpop.f32.mrb[0].mxu0
    %v1430 = vpop.f32.mrb[0].mxu0
    %v1431 = vadd.f32 0.0, %v1430
    %v1432 = vpop.f32.mrb[0].mxu0
    %1433 = vmatprep.mubr.bf16.mxu0 0
    %1434 = vmatmul.mubr.bf16.gmra.mrb[0].mxu0 %v1391
    %v1435 = vpop.f32.mrb[0].mxu0
    %v1436 = vadd.f32 0.0, %v1435
    %v1437 = vpop.f32.mrb[0].mxu0
    %v1438 = vpop.f32.mrb[0].mxu0
    %v1439 = vadd.f32 0.0, %v1438
    %v1440 = vpop.f32.mrb[0].mxu0
    %1441 = vdwg.mxu0
    %v1442 = vadd.f32 %v1240, %v1428
    %v1443 = vadd.f32 %v1243, %v1431
    %v1444 = vadd.f32 %v1248, %v1436
    %v1445 = vadd.f32 %v1251, %v1439
    %1450 = vrot.lane.b32.xlu0 %v1442, 64
    %v1451 = vpop.permute.xlu0 %1450
    %1452 = vrot.lane.b32.xlu0 %v1443, 64
    %v1453 = vpop.permute.xlu0 %1452
    %1454 = vrot.lane.b32.xlu0 %v1444, 64
    %v1455 = vpop.permute.xlu0 %1454
    %1456 = vrot.lane.b32.xlu0 %v1445, 64
    %v1457 = vpop.permute.xlu0 %1456
    %v1462 = vadd.f32 %v507, %v1451
    %v1463 = vadd.f32 %v508, %v1453
    %v1464 = vadd.f32 %v509, %v1455
    %v1465 = vadd.f32 %v510, %v1457
    %v1466 = vtanh.pop %v1462
    %v1467 = vtanh.pop %v1463
    %v1468 = vtanh.pop %v1464
    %v1469 = vtanh.pop %v1465
    %v1470 = vmul.f32 %v952, %v88
    %v1471 = vmul.f32 %v954, %v89
    %v1472 = vmul.f32 %v956, %v90
    %v1473 = vmul.f32 %v958, %v91
    %v1474 = vsub.f32 1.0, %v952
    %v1475 = vsub.f32 1.0, %v954
    %v1476 = vsub.f32 1.0, %v956
    %v1477 = vsub.f32 1.0, %v958
    %1482 = vrot.lane.b32.xlu0 %v1466, 64
    %v1483 = vpop.permute.xlu0 %1482
    %1484 = vrot.lane.b32.xlu0 %v1467, 64
    %v1485 = vpop.permute.xlu0 %1484
    %1486 = vrot.lane.b32.xlu0 %v1468, 64
    %v1487 = vpop.permute.xlu0 %1486
    %1488 = vrot.lane.b32.xlu0 %v1469, 64
    %v1489 = vpop.permute.xlu0 %1488
    %v1494 = vmul.f32 %v1474, %v1483
    %v1495 = vmul.f32 %v1475, %v1485
    %v1496 = vmul.f32 %v1476, %v1487
    %v1497 = vmul.f32 %v1477, %v1489
    %v1498 = vadd.f32 %v1470, %v1494
    %v1499 = vadd.f32 %v1471, %v1495
    %v1500 = vadd.f32 %v1472, %v1496
    %v1501 = vadd.f32 %v1473, %v1497
    %v1502 = vsel %vm640, %v1498, 0.0
    %1503 = vadd.xlane.f32.xlu0 %v1502
    %v1504 = vpop.xlane.xlu0 %1503
    %v1505 = vsel %vm640, %v1499, 0.0
    %1506 = vadd.xlane.f32.xlu0 %v1505
    %v1507 = vpop.xlane.xlu0 %1506
    %v1508 = vsel %vm640, %v1500, 0.0
    %1509 = vadd.xlane.f32.xlu0 %v1508
    %v1510 = vpop.xlane.xlu0 %1509
    %v1511 = vsel %vm640, %v1501, 0.0
    %1512 = vadd.xlane.f32.xlu0 %v1511
    %v1513 = vpop.xlane.xlu0 %1512
    %v1514 = vrcp.pop 32.0
    %v1515 = vmul.f32 %v1504, %v1514
    %v1516 = vmul.f32 %v1507, %v1514
    %v1517 = vmul.f32 %v1510, %v1514
    %v1518 = vmul.f32 %v1513, %v1514
    %v1519 = vsub.f32 %v1498, %v1515
    %v1520 = vsub.f32 %v1499, %v1516
    %v1521 = vsub.f32 %v1500, %v1517
    %v1522 = vsub.f32 %v1501, %v1518
    %v1523 = vmul.f32 %v1519, %v1519
    %v1524 = vmul.f32 %v1520, %v1520
    %v1525 = vmul.f32 %v1521, %v1521
    %v1526 = vmul.f32 %v1522, %v1522
    %v1527 = vsel %vm640, %v1523, 0.0
    %1528 = vadd.xlane.f32.xlu0 %v1527
    %v1529 = vpop.xlane.xlu0 %1528
    %v1530 = vsel %vm640, %v1524, 0.0
    %1531 = vadd.xlane.f32.xlu0 %v1530
    %v1532 = vpop.xlane.xlu0 %1531
    %v1533 = vsel %vm640, %v1525, 0.0
    %1534 = vadd.xlane.f32.xlu0 %v1533
    %v1535 = vpop.xlane.xlu0 %1534
    %v1536 = vsel %vm640, %v1526, 0.0
    %1537 = vadd.xlane.f32.xlu0 %v1536
    %v1538 = vpop.xlane.xlu0 %1537
    %v1539 = vmul.f32 %v1529, %v1514
    %v1540 = vmul.f32 %v1532, %v1514
    %v1541 = vmul.f32 %v1535, %v1514
    %v1542 = vmul.f32 %v1538, %v1514
    %v1543 = vadd.f32 %v1539, 1e-05
    %v1544 = vadd.f32 %v1540, 1e-05
    %v1545 = vadd.f32 %v1541, 1e-05
    %v1546 = vadd.f32 %v1542, 1e-05
    %v1547 = vrsqrt.pop %v1543
    %v1548 = vrsqrt.pop %v1544
    %v1549 = vrsqrt.pop %v1545
    %v1550 = vrsqrt.pop %v1546
    %v1551 = vmul.f32 %v1519, %v1547
    %v1552 = vmul.f32 %v1520, %v1548
    %v1553 = vmul.f32 %v1521, %v1549
    %v1554 = vmul.f32 %v1522, %v1550
    %v1555 = vld [vmem:[%s7] sm:$0x1]
    %v1557 = vlaneseq
    %v1558 = vshrl.u32 %v1557, 7
    %v1559 = vsub.s32 0, %v1558
    %v1560 = vrot.slane %v1555, %v1559
    %v1562 = vmul.f32 %v1551, %v1560
    %v1563 = vmul.f32 %v1552, %v1560
    %v1564 = vmul.f32 %v1553, %v1560
    %v1565 = vmul.f32 %v1554, %v1560
    %v1566 = vld [vmem:[%s8] sm:$0x1]
    %v1568 = vlaneseq
    %v1569 = vshrl.u32 %v1568, 7
    %v1570 = vsub.s32 0, %v1569
    %v1571 = vrot.slane %v1566, %v1570
    %v1573 = vadd.f32 %v1562, %v1571
    %v1574 = vadd.f32 %v1563, %v1571
    %v1575 = vadd.f32 %v1564, %v1571
    %v1576 = vadd.f32 %v1565, %v1571
    %1577 = vst.msk [vmem:[#allocation8] sm:$0xff] %vm640, %v1573
    %1578 = vst.msk [vmem:[#allocation8 + $0x8] sm:$0xff] %vm640, %v1574
    %1579 = vst.msk [vmem:[#allocation8 + $0x10] sm:$0xff] %vm640, %v1575
    %1580 = vst.msk [vmem:[#allocation8 + $0x18] sm:$0xff] %vm640, %v1576
    %v1581 = vmul.f32 %v1573, 0.7
    %v1582 = vmul.f32 %v1574, 0.7
    %v1583 = vmul.f32 %v1575, 0.7
    %v1584 = vmul.f32 %v1576, 0.7
    %v1585 = vadd.f32 %v515, %v1581
    %v1586 = vadd.f32 %v516, %v1582
    %v1587 = vadd.f32 %v517, %v1583
    %v1588 = vadd.f32 %v518, %v1584
    %1589 = vst.msk [vmem:[#allocation9] sm:$0xff] %vm640, %v1585
    %1590 = vst.msk [vmem:[#allocation9 + $0x8] sm:$0xff] %vm640, %v1586
    %1591 = vst.msk [vmem:[#allocation9 + $0x10] sm:$0xff] %vm640, %v1587
    %1592 = vst.msk [vmem:[#allocation9 + $0x18] sm:$0xff] %vm640, %v1588
    // Predicated region
    $region50: #{tpu_custom_call.1} parent=1 // pred_check
      _
    $region51: #{tpu_custom_call.1} parent=1 // pred_check_branch
      %1594 = sbr.rel (0) target = $region53
    $region52: #{tpu_custom_call.1} parent=1 // pred_region
      %s1596 = ssub.s32 512, 512
      %1597 = vsyncadd [#allocation4], %s1596
      %s1598 = sshll.u32 [#allocation8], 4
      %s1599 = int_to_ptr.vmem [resolvable:$true] %s1598
      %1604 = dma.vmem_to_hbm [thread:$0]  %s1599, 512, %s9, [#allocation4], 128, 128, 8
    $region53: #{tpu_custom_call.1} parent=1 // pred_fallthru
      _
    // Predicated region
    $region54: #{tpu_custom_call.1} parent=1 // pred_check
      _
    $region55: #{tpu_custom_call.1} parent=1 // pred_check_branch
      %1606 = sbr.rel (0) target = $region57
    $region56: #{tpu_custom_call.1} parent=1 // pred_region
      %s1608 = ssub.s32 512, 512
      %1609 = vsyncadd [#allocation10], %s1608
      %s1610 = sshll.u32 [#allocation9], 4
      %s1611 = int_to_ptr.vmem [resolvable:$true] %s1610
      %1616 = dma.vmem_to_hbm [thread:$0]  %s1611, 512, %s10, [#allocation10], 128, 128, 8
    $region57: #{tpu_custom_call.1} parent=1 // pred_fallthru
      _
    // Predicated region
    $region58: #{tpu_custom_call.1} parent=1 // pred_check
      _
    $region59: #{tpu_custom_call.1} parent=1 // pred_check_branch
      %1618 = sbr.rel (0) target = $region61
    $region60: #{tpu_custom_call.1} parent=1 // pred_region
      %1619 = dma.done [#allocation4], 512
    $region61: #{tpu_custom_call.1} parent=1 // pred_fallthru
      _
    // Predicated region
    $region62: #{tpu_custom_call.1} parent=1 // pred_check
      _
    $region63: #{tpu_custom_call.1} parent=1 // pred_check_branch
      %1621 = sbr.rel (0) target = $region65
    $region64: #{tpu_custom_call.1} parent=1 // pred_region
      %1622 = dma.done [#allocation10], 512
    $region65: #{tpu_custom_call.1} parent=1 // pred_fallthru
      _
    %1623 = vsyncpa [#allocation3], 1
    %1624 = vsyncpa [#allocation6], 1
    %1625 = vsyncpa [#allocation4], 1
    %1626 = vsyncpa [#allocation10], 1

</llo_original>
